<compile_context>
chip_gen: v7x
topology: tpu7x:2x2x1
jax: 0.10.0
libtpu: 0.0.40
codegen_flags: <defaults>
</compile_context>

<pallas_src>
import jax
import jax.numpy as jnp
from jax.experimental import pallas as pl
from jax.experimental.pallas import tpu as pltpu

KH = KW = 5
STRIDE = 2
PAD = 2
EPS = 1e-5
C_BLK = 128          # channel block = lane width


def relu_dwconv_bn_kernel(x_ref, w_ref, g_ref, b_ref, o_ref, xq_ref):
    """One 128-channel block of: ReLU -> depthwise 5x5/s2 conv -> BatchNorm2d.

    x_ref : (N, HP, WP, CB)    spatially zero-padded input block
    w_ref : (KH, KW, CB)       depthwise filter taps
    g_ref, b_ref : (1, CB)     BN affine params
    o_ref : (N, OH, OW, CB)
    xq_ref: (4, N, QH, QW, CB) scratch: ReLU'd parity quadrants of the input
    """
    N = x_ref.shape[0]
    CB = x_ref.shape[3]
    OH, OW = o_ref.shape[1], o_ref.shape[2]
    QH, QW = xq_ref.shape[2], xq_ref.shape[3]

    # --- 1. ReLU (once per element, hoisted out of the tap loop) + parity split:
    #        stride-2 access becomes unit-stride. 4 strided loads total.
    for ph in range(2):
        for pw in range(2):
            xq_ref[2 * ph + pw] = jnp.maximum(
                x_ref[:, pl.ds(ph, QH, stride=2), pl.ds(pw, QW, stride=2), :],
                0.0)

    # --- 2. Depthwise 5x5 stride-2 conv. Taps are grouped by their W offset
    #        (kw // 2) so only 3 misaligned sublane extracts are needed; the H
    #        offset (kh // 2) is a free row-addressed slice of the scratch.
    acc = jnp.zeros((N, OH, OW, CB), jnp.float32)
    for dw in range(KW // 2 + 1):                       # W offset group: 0, 1, 2
        kws = [kw for kw in range(KW) if kw // 2 == dw]
        s = jnp.zeros((N, OH, QW, CB), jnp.float32)
        for kh in range(KH):
            ph, dh = kh % 2, kh // 2
            for kw in kws:
                q = 2 * ph + (kw % 2)
                wv = w_ref[kh, kw, :].reshape(1, 1, 1, CB)
                s = s + xq_ref[q, :, pl.ds(dh, OH), :, :] * wv
        acc = acc + s[:, :, dw:dw + OW, :]

    # --- 3. BatchNorm2d (training-mode biased batch stats): single-pass moments,
    #        folded affine => one scale/bias pass over the accumulator.
    inv_cnt = 1.0 / float(N * OH * OW)
    s1 = jnp.sum(acc, axis=2, keepdims=True)
    s1 = jnp.sum(s1, axis=1, keepdims=True)
    s1 = jnp.sum(s1, axis=0, keepdims=True)             # (1, 1, 1, CB)
    s2 = jnp.sum(acc * acc, axis=2, keepdims=True)
    s2 = jnp.sum(s2, axis=1, keepdims=True)
    s2 = jnp.sum(s2, axis=0, keepdims=True)
    mean = s1 * inv_cnt
    var = jnp.maximum(s2 * inv_cnt - mean * mean, 0.0)
    inv = jax.lax.rsqrt(var + EPS)
    scale = inv * g_ref[...].reshape(1, 1, 1, CB)
    shift = b_ref[...].reshape(1, 1, 1, CB) - mean * scale
    o_ref[...] = acc * scale + shift


def m_forward(x_nchw, w_oihw, gamma, beta):
    """Pallas implementation of M.forward (ReLU -> dw-conv 5x5/s2 -> BN)."""
    N, C, H, W = x_nchw.shape
    OH = (H + 2 * PAD - KH) // STRIDE + 1
    OW = (W + 2 * PAD - KW) // STRIDE + 1
    HP, WP = H + 2 * PAD, W + 2 * PAD
    assert HP % 2 == 0 and WP % 2 == 0, "parity split needs even padded extents"
    QH, QW = HP // 2, WP // 2
    CP = ((C + C_BLK - 1) // C_BLK) * C_BLK             # lane-dense channel count

    # Single layout pass: NCHW -> NHWC, zero-pad spatial borders and channels.
    x = jnp.transpose(x_nchw, (0, 2, 3, 1)).astype(jnp.float32)
    xp = jnp.pad(x, ((0, 0), (PAD, PAD), (PAD, PAD), (0, CP - C)))

    # Depthwise weight (C, 1, KH, KW) -> (KH, KW, CP); BN params -> (1, CP).
    w = jnp.pad(jnp.transpose(w_oihw[:, 0, :, :], (1, 2, 0)).astype(jnp.float32),
                ((0, 0), (0, 0), (0, CP - C)))
    g2 = jnp.pad(gamma.reshape(1, C).astype(jnp.float32), ((0, 0), (0, CP - C)))
    b2 = jnp.pad(beta.reshape(1, C).astype(jnp.float32), ((0, 0), (0, CP - C)))

    out_nhwc = pl.pallas_call(
        relu_dwconv_bn_kernel,
        out_shape=jax.ShapeDtypeStruct((N, OH, OW, CP), jnp.float32),
        grid_spec=pltpu.PrefetchScalarGridSpec(
            num_scalar_prefetch=0,
            grid=(CP // C_BLK,),
            in_specs=[
                pl.BlockSpec((N, HP, WP, C_BLK), lambda c: (0, 0, 0, c)),
                pl.BlockSpec((KH, KW, C_BLK), lambda c: (0, 0, c)),
                pl.BlockSpec((1, C_BLK), lambda c: (0, c)),
                pl.BlockSpec((1, C_BLK), lambda c: (0, c)),
            ],
            out_specs=pl.BlockSpec((N, OH, OW, C_BLK), lambda c: (0, 0, 0, c)),
            scratch_shapes=[pltpu.VMEM((4, N, QH, QW, C_BLK), jnp.float32)],
        ),
        compiler_params=pltpu.CompilerParams(
            dimension_semantics=("parallel",)),
    )(xp, w, g2, b2)

    # Drop channel padding and go back to NCHW (slice fuses with the transpose).
    return jnp.transpose(out_nhwc[:, :, :, :C], (0, 3, 1, 2))


def m_forward_ref(x_nchw, w_oihw, gamma, beta):
    """Pure-JAX reference mirroring the PyTorch module (training-mode BN)."""
    x = jnp.maximum(x_nchw, 0.0)
    y = jax.lax.conv_general_dilated(
        x, w_oihw, window_strides=(STRIDE, STRIDE),
        padding=((PAD, PAD), (PAD, PAD)),
        dimension_numbers=("NCHW", "OIHW", "NCHW"),
        feature_group_count=x.shape[1])
    mean = jnp.mean(y, axis=(0, 2, 3), keepdims=True)
    var = jnp.mean((y - mean) ** 2, axis=(0, 2, 3), keepdims=True)
    return ((y - mean) * jax.lax.rsqrt(var + EPS)
            * gamma.reshape(1, -1, 1, 1) + beta.reshape(1, -1, 1, 1))


if __name__ == "__main__":
    key = jax.random.PRNGKey(0)
    k1, k2, k3, k4 = jax.random.split(key, 4)
    N, C, H, W = 1, 576, 14, 14                      # shapes implied by the module
    x = jax.random.normal(k1, (N, C, H, W), jnp.float32)
    w = 0.1 * jax.random.normal(k2, (C, 1, KH, KW), jnp.float32)
    gamma = 1.0 + 0.1 * jax.random.normal(k3, (C,), jnp.float32)
    beta = 0.1 * jax.random.normal(k4, (C,), jnp.float32)

    out = jax.jit(m_forward)(x, w, gamma, beta)
    out = jax.block_until_ready(out)

    OH = (H + 2 * PAD - KH) // STRIDE + 1
    OW = (W + 2 * PAD - KW) // STRIDE + 1
    assert out.shape == (N, C, OH, OW), out.shape

    ref = m_forward_ref(x, w, gamma, beta)
    max_err = float(jnp.max(jnp.abs(out - ref)))
    assert jnp.allclose(out, ref, atol=1e-4, rtol=1e-4), max_err
    print("KERNEL_OK")
</pallas_src>

<mosaic_0001>
module attributes {stable_mosaic.version = 11 : i64} {
  func.func @relu_dwconv_bn_kernel(%arg0: i32, %arg1: memref<1x18x18x128xf32, #tpu.memory_space<vmem>>, %arg2: memref<5x5x128xf32, #tpu.memory_space<vmem>>, %arg3: memref<1x128xf32, #tpu.memory_space<vmem>>, %arg4: memref<1x128xf32, #tpu.memory_space<vmem>>, %arg5: memref<1x7x7x128xf32, #tpu.memory_space<vmem>>, %arg6: memref<4x1x9x9x128xf32, #tpu.memory_space<vmem>>) attributes {dimension_semantics = [#tpu.dimension_semantics<parallel>], iteration_bounds = array<i64: 5>, scalar_prefetch = 0 : i64, scratch_operands = 1 : i64, tpu.core_type = #tpu.core_type<tc>, window_params = [{transform_indices = @transform_0, window_bounds = array<i64: 1, 18, 18, 128>}, {transform_indices = @transform_1, window_bounds = array<i64: 5, 5, 128>}, {transform_indices = @transform_2, window_bounds = array<i64: 1, 128>}, {transform_indices = @transform_3, window_bounds = array<i64: 1, 128>}, {transform_indices = @transform_4, window_bounds = array<i64: 1, 7, 7, 128>}]} {
    %c0 = arith.constant 0 : index
    %c0_0 = arith.constant 0 : index
    %c0_1 = arith.constant 0 : index
    %c0_2 = arith.constant 0 : index
    %0 = tpu.strided_load %arg1[%c0, %c0_0, %c0_1, %c0_2] {strides = array<i32: 1, 2, 2, 1>} : memref<1x18x18x128xf32, #tpu.memory_space<vmem>>, vector<1x9x9x128xf32>
    %cst = arith.constant 0.000000e+00 : f32
    %1 = vector.broadcast %cst : f32 to vector<1x9x9x128xf32>
    %2 = arith.maximumf %0, %1 : vector<1x9x9x128xf32>
    %c0_3 = arith.constant 0 : index
    %c0_4 = arith.constant 0 : index
    %c0_5 = arith.constant 0 : index
    %c0_6 = arith.constant 0 : index
    %c0_7 = arith.constant 0 : index
    %3 = vector.load %arg6[%c0_3, %c0_4, %c0_5, %c0_6, %c0_7] : memref<4x1x9x9x128xf32, #tpu.memory_space<vmem>>, vector<1x1x9x9x128xf32>
    %4 = vector.shape_cast %3 : vector<1x1x9x9x128xf32> to vector<1x9x9x128xf32>
    %5 = vector.shape_cast %2 : vector<1x9x9x128xf32> to vector<1x1x9x9x128xf32>
    tpu.vector_store %arg6[%c0_3, %c0_4, %c0_5, %c0_6, %c0_7], %5 {strides = array<i32>} : memref<4x1x9x9x128xf32, #tpu.memory_space<vmem>>, vector<1x1x9x9x128xf32>,
    %c0_8 = arith.constant 0 : index
    %c0_9 = arith.constant 0 : index
    %c1 = arith.constant 1 : index
    %c0_10 = arith.constant 0 : index
    %6 = tpu.strided_load %arg1[%c0_8, %c0_9, %c1, %c0_10] {strides = array<i32: 1, 2, 2, 1>} : memref<1x18x18x128xf32, #tpu.memory_space<vmem>>, vector<1x9x9x128xf32>
    %cst_11 = arith.constant 0.000000e+00 : f32
    %7 = vector.broadcast %cst_11 : f32 to vector<1x9x9x128xf32>
    %8 = arith.maximumf %6, %7 : vector<1x9x9x128xf32>
    %c1_12 = arith.constant 1 : index
    %c0_13 = arith.constant 0 : index
    %c0_14 = arith.constant 0 : index
    %c0_15 = arith.constant 0 : index
    %c0_16 = arith.constant 0 : index
    %9 = vector.load %arg6[%c1_12, %c0_13, %c0_14, %c0_15, %c0_16] : memref<4x1x9x9x128xf32, #tpu.memory_space<vmem>>, vector<1x1x9x9x128xf32>
    %10 = vector.shape_cast %9 : vector<1x1x9x9x128xf32> to vector<1x9x9x128xf32>
    %11 = vector.shape_cast %8 : vector<1x9x9x128xf32> to vector<1x1x9x9x128xf32>
    tpu.vector_store %arg6[%c1_12, %c0_13, %c0_14, %c0_15, %c0_16], %11 {strides = array<i32>} : memref<4x1x9x9x128xf32, #tpu.memory_space<vmem>>, vector<1x1x9x9x128xf32>,
    %c0_17 = arith.constant 0 : index
    %c1_18 = arith.constant 1 : index
    %c0_19 = arith.constant 0 : index
    %c0_20 = arith.constant 0 : index
    %12 = tpu.strided_load %arg1[%c0_17, %c1_18, %c0_19, %c0_20] {strides = array<i32: 1, 2, 2, 1>} : memref<1x18x18x128xf32, #tpu.memory_space<vmem>>, vector<1x9x9x128xf32>
    %cst_21 = arith.constant 0.000000e+00 : f32
    %13 = vector.broadcast %cst_21 : f32 to vector<1x9x9x128xf32>
    %14 = arith.maximumf %12, %13 : vector<1x9x9x128xf32>
    %c2 = arith.constant 2 : index
    %c0_22 = arith.constant 0 : index
    %c0_23 = arith.constant 0 : index
    %c0_24 = arith.constant 0 : index
    %c0_25 = arith.constant 0 : index
    %15 = vector.load %arg6[%c2, %c0_22, %c0_23, %c0_24, %c0_25] : memref<4x1x9x9x128xf32, #tpu.memory_space<vmem>>, vector<1x1x9x9x128xf32>
    %16 = vector.shape_cast %15 : vector<1x1x9x9x128xf32> to vector<1x9x9x128xf32>
    %17 = vector.shape_cast %14 : vector<1x9x9x128xf32> to vector<1x1x9x9x128xf32>
    tpu.vector_store %arg6[%c2, %c0_22, %c0_23, %c0_24, %c0_25], %17 {strides = array<i32>} : memref<4x1x9x9x128xf32, #tpu.memory_space<vmem>>, vector<1x1x9x9x128xf32>,
    %c0_26 = arith.constant 0 : index
    %c1_27 = arith.constant 1 : index
    %c1_28 = arith.constant 1 : index
    %c0_29 = arith.constant 0 : index
    %18 = tpu.strided_load %arg1[%c0_26, %c1_27, %c1_28, %c0_29] {strides = array<i32: 1, 2, 2, 1>} : memref<1x18x18x128xf32, #tpu.memory_space<vmem>>, vector<1x9x9x128xf32>
    %cst_30 = arith.constant 0.000000e+00 : f32
    %19 = vector.broadcast %cst_30 : f32 to vector<1x9x9x128xf32>
    %20 = arith.maximumf %18, %19 : vector<1x9x9x128xf32>
    %c3 = arith.constant 3 : index
    %c0_31 = arith.constant 0 : index
    %c0_32 = arith.constant 0 : index
    %c0_33 = arith.constant 0 : index
    %c0_34 = arith.constant 0 : index
    %21 = vector.load %arg6[%c3, %c0_31, %c0_32, %c0_33, %c0_34] : memref<4x1x9x9x128xf32, #tpu.memory_space<vmem>>, vector<1x1x9x9x128xf32>
    %22 = vector.shape_cast %21 : vector<1x1x9x9x128xf32> to vector<1x9x9x128xf32>
    %23 = vector.shape_cast %20 : vector<1x9x9x128xf32> to vector<1x1x9x9x128xf32>
    tpu.vector_store %arg6[%c3, %c0_31, %c0_32, %c0_33, %c0_34], %23 {strides = array<i32>} : memref<4x1x9x9x128xf32, #tpu.memory_space<vmem>>, vector<1x1x9x9x128xf32>,
    %cst_35 = arith.constant 0.000000e+00 : f32
    %24 = vector.broadcast %cst_35 : f32 to vector<1x7x7x128xf32>
    %cst_36 = arith.constant 0.000000e+00 : f32
    %25 = vector.broadcast %cst_36 : f32 to vector<1x7x9x128xf32>
    %c0_37 = arith.constant 0 : index
    %c0_38 = arith.constant 0 : index
    %c0_39 = arith.constant 0 : index
    %26 = vector.load %arg2[%c0_37, %c0_38, %c0_39] : memref<5x5x128xf32, #tpu.memory_space<vmem>>, vector<1x1x128xf32>
    %27 = vector.shape_cast %26 : vector<1x1x128xf32> to vector<128xf32>
    %28 = vector.shape_cast %27 : vector<128xf32> to vector<1x1x1x128xf32>
    %c0_40 = arith.constant 0 : index
    %c0_41 = arith.constant 0 : index
    %c0_42 = arith.constant 0 : index
    %c0_43 = arith.constant 0 : index
    %c0_44 = arith.constant 0 : index
    %29 = vector.load %arg6[%c0_40, %c0_41, %c0_42, %c0_43, %c0_44] : memref<4x1x9x9x128xf32, #tpu.memory_space<vmem>>, vector<1x1x7x9x128xf32>
    %30 = vector.shape_cast %29 : vector<1x1x7x9x128xf32> to vector<1x7x9x128xf32>
    %31 = vector.broadcast %28 : vector<1x1x1x128xf32> to vector<1x7x9x128xf32>
    %32 = arith.mulf %30, %31 : vector<1x7x9x128xf32>
    %33 = arith.addf %25, %32 : vector<1x7x9x128xf32>
    %c0_45 = arith.constant 0 : index
    %c1_46 = arith.constant 1 : index
    %c0_47 = arith.constant 0 : index
    %34 = vector.load %arg2[%c0_45, %c1_46, %c0_47] : memref<5x5x128xf32, #tpu.memory_space<vmem>>, vector<1x1x128xf32>
    %35 = vector.shape_cast %34 : vector<1x1x128xf32> to vector<128xf32>
    %36 = vector.shape_cast %35 : vector<128xf32> to vector<1x1x1x128xf32>
    %c1_48 = arith.constant 1 : index
    %c0_49 = arith.constant 0 : index
    %c0_50 = arith.constant 0 : index
    %c0_51 = arith.constant 0 : index
    %c0_52 = arith.constant 0 : index
    %37 = vector.load %arg6[%c1_48, %c0_49, %c0_50, %c0_51, %c0_52] : memref<4x1x9x9x128xf32, #tpu.memory_space<vmem>>, vector<1x1x7x9x128xf32>
    %38 = vector.shape_cast %37 : vector<1x1x7x9x128xf32> to vector<1x7x9x128xf32>
    %39 = vector.broadcast %36 : vector<1x1x1x128xf32> to vector<1x7x9x128xf32>
    %40 = arith.mulf %38, %39 : vector<1x7x9x128xf32>
    %41 = arith.addf %33, %40 : vector<1x7x9x128xf32>
    %c1_53 = arith.constant 1 : index
    %c0_54 = arith.constant 0 : index
    %c0_55 = arith.constant 0 : index
    %42 = vector.load %arg2[%c1_53, %c0_54, %c0_55] : memref<5x5x128xf32, #tpu.memory_space<vmem>>, vector<1x1x128xf32>
    %43 = vector.shape_cast %42 : vector<1x1x128xf32> to vector<128xf32>
    %44 = vector.shape_cast %43 : vector<128xf32> to vector<1x1x1x128xf32>
    %c2_56 = arith.constant 2 : index
    %c0_57 = arith.constant 0 : index
    %c0_58 = arith.constant 0 : index
    %c0_59 = arith.constant 0 : index
    %c0_60 = arith.constant 0 : index
    %45 = vector.load %arg6[%c2_56, %c0_57, %c0_58, %c0_59, %c0_60] : memref<4x1x9x9x128xf32, #tpu.memory_space<vmem>>, vector<1x1x7x9x128xf32>
    %46 = vector.shape_cast %45 : vector<1x1x7x9x128xf32> to vector<1x7x9x128xf32>
    %47 = vector.broadcast %44 : vector<1x1x1x128xf32> to vector<1x7x9x128xf32>
    %48 = arith.mulf %46, %47 : vector<1x7x9x128xf32>
    %49 = arith.addf %41, %48 : vector<1x7x9x128xf32>
    %c1_61 = arith.constant 1 : index
    %c1_62 = arith.constant 1 : index
    %c0_63 = arith.constant 0 : index
    %50 = vector.load %arg2[%c1_61, %c1_62, %c0_63] : memref<5x5x128xf32, #tpu.memory_space<vmem>>, vector<1x1x128xf32>
    %51 = vector.shape_cast %50 : vector<1x1x128xf32> to vector<128xf32>
    %52 = vector.shape_cast %51 : vector<128xf32> to vector<1x1x1x128xf32>
    %c3_64 = arith.constant 3 : index
    %c0_65 = arith.constant 0 : index
    %c0_66 = arith.constant 0 : index
    %c0_67 = arith.constant 0 : index
    %c0_68 = arith.constant 0 : index
    %53 = vector.load %arg6[%c3_64, %c0_65, %c0_66, %c0_67, %c0_68] : memref<4x1x9x9x128xf32, #tpu.memory_space<vmem>>, vector<1x1x7x9x128xf32>
    %54 = vector.shape_cast %53 : vector<1x1x7x9x128xf32> to vector<1x7x9x128xf32>
    %55 = vector.broadcast %52 : vector<1x1x1x128xf32> to vector<1x7x9x128xf32>
    %56 = arith.mulf %54, %55 : vector<1x7x9x128xf32>
    %57 = arith.addf %49, %56 : vector<1x7x9x128xf32>
    %c2_69 = arith.constant 2 : index
    %c0_70 = arith.constant 0 : index
    %c0_71 = arith.constant 0 : index
    %58 = vector.load %arg2[%c2_69, %c0_70, %c0_71] : memref<5x5x128xf32, #tpu.memory_space<vmem>>, vector<1x1x128xf32>
    %59 = vector.shape_cast %58 : vector<1x1x128xf32> to vector<128xf32>
    %60 = vector.shape_cast %59 : vector<128xf32> to vector<1x1x1x128xf32>
    %c0_72 = arith.constant 0 : index
    %c0_73 = arith.constant 0 : index
    %c1_74 = arith.constant 1 : index
    %c0_75 = arith.constant 0 : index
    %c0_76 = arith.constant 0 : index
    %61 = vector.load %arg6[%c0_72, %c0_73, %c1_74, %c0_75, %c0_76] : memref<4x1x9x9x128xf32, #tpu.memory_space<vmem>>, vector<1x1x7x9x128xf32>
    %62 = vector.shape_cast %61 : vector<1x1x7x9x128xf32> to vector<1x7x9x128xf32>
    %63 = vector.broadcast %60 : vector<1x1x1x128xf32> to vector<1x7x9x128xf32>
    %64 = arith.mulf %62, %63 : vector<1x7x9x128xf32>
    %65 = arith.addf %57, %64 : vector<1x7x9x128xf32>
    %c2_77 = arith.constant 2 : index
    %c1_78 = arith.constant 1 : index
    %c0_79 = arith.constant 0 : index
    %66 = vector.load %arg2[%c2_77, %c1_78, %c0_79] : memref<5x5x128xf32, #tpu.memory_space<vmem>>, vector<1x1x128xf32>
    %67 = vector.shape_cast %66 : vector<1x1x128xf32> to vector<128xf32>
    %68 = vector.shape_cast %67 : vector<128xf32> to vector<1x1x1x128xf32>
    %c1_80 = arith.constant 1 : index
    %c0_81 = arith.constant 0 : index
    %c1_82 = arith.constant 1 : index
    %c0_83 = arith.constant 0 : index
    %c0_84 = arith.constant 0 : index
    %69 = vector.load %arg6[%c1_80, %c0_81, %c1_82, %c0_83, %c0_84] : memref<4x1x9x9x128xf32, #tpu.memory_space<vmem>>, vector<1x1x7x9x128xf32>
    %70 = vector.shape_cast %69 : vector<1x1x7x9x128xf32> to vector<1x7x9x128xf32>
    %71 = vector.broadcast %68 : vector<1x1x1x128xf32> to vector<1x7x9x128xf32>
    %72 = arith.mulf %70, %71 : vector<1x7x9x128xf32>
    %73 = arith.addf %65, %72 : vector<1x7x9x128xf32>
    %c3_85 = arith.constant 3 : index
    %c0_86 = arith.constant 0 : index
    %c0_87 = arith.constant 0 : index
    %74 = vector.load %arg2[%c3_85, %c0_86, %c0_87] : memref<5x5x128xf32, #tpu.memory_space<vmem>>, vector<1x1x128xf32>
    %75 = vector.shape_cast %74 : vector<1x1x128xf32> to vector<128xf32>
    %76 = vector.shape_cast %75 : vector<128xf32> to vector<1x1x1x128xf32>
    %c2_88 = arith.constant 2 : index
    %c0_89 = arith.constant 0 : index
    %c1_90 = arith.constant 1 : index
    %c0_91 = arith.constant 0 : index
    %c0_92 = arith.constant 0 : index
    %77 = vector.load %arg6[%c2_88, %c0_89, %c1_90, %c0_91, %c0_92] : memref<4x1x9x9x128xf32, #tpu.memory_space<vmem>>, vector<1x1x7x9x128xf32>
    %78 = vector.shape_cast %77 : vector<1x1x7x9x128xf32> to vector<1x7x9x128xf32>
    %79 = vector.broadcast %76 : vector<1x1x1x128xf32> to vector<1x7x9x128xf32>
    %80 = arith.mulf %78, %79 : vector<1x7x9x128xf32>
    %81 = arith.addf %73, %80 : vector<1x7x9x128xf32>
    %c3_93 = arith.constant 3 : index
    %c1_94 = arith.constant 1 : index
    %c0_95 = arith.constant 0 : index
    %82 = vector.load %arg2[%c3_93, %c1_94, %c0_95] : memref<5x5x128xf32, #tpu.memory_space<vmem>>, vector<1x1x128xf32>
    %83 = vector.shape_cast %82 : vector<1x1x128xf32> to vector<128xf32>
    %84 = vector.shape_cast %83 : vector<128xf32> to vector<1x1x1x128xf32>
    %c3_96 = arith.constant 3 : index
    %c0_97 = arith.constant 0 : index
    %c1_98 = arith.constant 1 : index
    %c0_99 = arith.constant 0 : index
    %c0_100 = arith.constant 0 : index
    %85 = vector.load %arg6[%c3_96, %c0_97, %c1_98, %c0_99, %c0_100] : memref<4x1x9x9x128xf32, #tpu.memory_space<vmem>>, vector<1x1x7x9x128xf32>
    %86 = vector.shape_cast %85 : vector<1x1x7x9x128xf32> to vector<1x7x9x128xf32>
    %87 = vector.broadcast %84 : vector<1x1x1x128xf32> to vector<1x7x9x128xf32>
    %88 = arith.mulf %86, %87 : vector<1x7x9x128xf32>
    %89 = arith.addf %81, %88 : vector<1x7x9x128xf32>
    %c4 = arith.constant 4 : index
    %c0_101 = arith.constant 0 : index
    %c0_102 = arith.constant 0 : index
    %90 = vector.load %arg2[%c4, %c0_101, %c0_102] : memref<5x5x128xf32, #tpu.memory_space<vmem>>, vector<1x1x128xf32>
    %91 = vector.shape_cast %90 : vector<1x1x128xf32> to vector<128xf32>
    %92 = vector.shape_cast %91 : vector<128xf32> to vector<1x1x1x128xf32>
    %c0_103 = arith.constant 0 : index
    %c0_104 = arith.constant 0 : index
    %c2_105 = arith.constant 2 : index
    %c0_106 = arith.constant 0 : index
    %c0_107 = arith.constant 0 : index
    %93 = vector.load %arg6[%c0_103, %c0_104, %c2_105, %c0_106, %c0_107] : memref<4x1x9x9x128xf32, #tpu.memory_space<vmem>>, vector<1x1x7x9x128xf32>
    %94 = vector.shape_cast %93 : vector<1x1x7x9x128xf32> to vector<1x7x9x128xf32>
    %95 = vector.broadcast %92 : vector<1x1x1x128xf32> to vector<1x7x9x128xf32>
    %96 = arith.mulf %94, %95 : vector<1x7x9x128xf32>
    %97 = arith.addf %89, %96 : vector<1x7x9x128xf32>
    %c4_108 = arith.constant 4 : index
    %c1_109 = arith.constant 1 : index
    %c0_110 = arith.constant 0 : index
    %98 = vector.load %arg2[%c4_108, %c1_109, %c0_110] : memref<5x5x128xf32, #tpu.memory_space<vmem>>, vector<1x1x128xf32>
    %99 = vector.shape_cast %98 : vector<1x1x128xf32> to vector<128xf32>
    %100 = vector.shape_cast %99 : vector<128xf32> to vector<1x1x1x128xf32>
    %c1_111 = arith.constant 1 : index
    %c0_112 = arith.constant 0 : index
    %c2_113 = arith.constant 2 : index
    %c0_114 = arith.constant 0 : index
    %c0_115 = arith.constant 0 : index
    %101 = vector.load %arg6[%c1_111, %c0_112, %c2_113, %c0_114, %c0_115] : memref<4x1x9x9x128xf32, #tpu.memory_space<vmem>>, vector<1x1x7x9x128xf32>
    %102 = vector.shape_cast %101 : vector<1x1x7x9x128xf32> to vector<1x7x9x128xf32>
    %103 = vector.broadcast %100 : vector<1x1x1x128xf32> to vector<1x7x9x128xf32>
    %104 = arith.mulf %102, %103 : vector<1x7x9x128xf32>
    %105 = arith.addf %97, %104 : vector<1x7x9x128xf32>
    %106 = vector.extract_strided_slice %105 {offsets = [0, 0, 0, 0], sizes = [1, 7, 7, 128], strides = [1, 1, 1, 1]} : vector<1x7x9x128xf32> to vector<1x7x7x128xf32>
    %107 = arith.addf %24, %106 : vector<1x7x7x128xf32>
    %cst_116 = arith.constant 0.000000e+00 : f32
    %108 = vector.broadcast %cst_116 : f32 to vector<1x7x9x128xf32>
    %c0_117 = arith.constant 0 : index
    %c2_118 = arith.constant 2 : index
    %c0_119 = arith.constant 0 : index
    %109 = vector.load %arg2[%c0_117, %c2_118, %c0_119] : memref<5x5x128xf32, #tpu.memory_space<vmem>>, vector<1x1x128xf32>
    %110 = vector.shape_cast %109 : vector<1x1x128xf32> to vector<128xf32>
    %111 = vector.shape_cast %110 : vector<128xf32> to vector<1x1x1x128xf32>
    %c0_120 = arith.constant 0 : index
    %c0_121 = arith.constant 0 : index
    %c0_122 = arith.constant 0 : index
    %c0_123 = arith.constant 0 : index
    %c0_124 = arith.constant 0 : index
    %112 = vector.load %arg6[%c0_120, %c0_121, %c0_122, %c0_123, %c0_124] : memref<4x1x9x9x128xf32, #tpu.memory_space<vmem>>, vector<1x1x7x9x128xf32>
    %113 = vector.shape_cast %112 : vector<1x1x7x9x128xf32> to vector<1x7x9x128xf32>
    %114 = vector.broadcast %111 : vector<1x1x1x128xf32> to vector<1x7x9x128xf32>
    %115 = arith.mulf %113, %114 : vector<1x7x9x128xf32>
    %116 = arith.addf %108, %115 : vector<1x7x9x128xf32>
    %c0_125 = arith.constant 0 : index
    %c3_126 = arith.constant 3 : index
    %c0_127 = arith.constant 0 : index
    %117 = vector.load %arg2[%c0_125, %c3_126, %c0_127] : memref<5x5x128xf32, #tpu.memory_space<vmem>>, vector<1x1x128xf32>
    %118 = vector.shape_cast %117 : vector<1x1x128xf32> to vector<128xf32>
    %119 = vector.shape_cast %118 : vector<128xf32> to vector<1x1x1x128xf32>
    %c1_128 = arith.constant 1 : index
    %c0_129 = arith.constant 0 : index
    %c0_130 = arith.constant 0 : index
    %c0_131 = arith.constant 0 : index
    %c0_132 = arith.constant 0 : index
    %120 = vector.load %arg6[%c1_128, %c0_129, %c0_130, %c0_131, %c0_132] : memref<4x1x9x9x128xf32, #tpu.memory_space<vmem>>, vector<1x1x7x9x128xf32>
    %121 = vector.shape_cast %120 : vector<1x1x7x9x128xf32> to vector<1x7x9x128xf32>
    %122 = vector.broadcast %119 : vector<1x1x1x128xf32> to vector<1x7x9x128xf32>
    %123 = arith.mulf %121, %122 : vector<1x7x9x128xf32>
    %124 = arith.addf %116, %123 : vector<1x7x9x128xf32>
    %c1_133 = arith.constant 1 : index
    %c2_134 = arith.constant 2 : index
    %c0_135 = arith.constant 0 : index
    %125 = vector.load %arg2[%c1_133, %c2_134, %c0_135] : memref<5x5x128xf32, #tpu.memory_space<vmem>>, vector<1x1x128xf32>
    %126 = vector.shape_cast %125 : vector<1x1x128xf32> to vector<128xf32>
    %127 = vector.shape_cast %126 : vector<128xf32> to vector<1x1x1x128xf32>
    %c2_136 = arith.constant 2 : index
    %c0_137 = arith.constant 0 : index
    %c0_138 = arith.constant 0 : index
    %c0_139 = arith.constant 0 : index
    %c0_140 = arith.constant 0 : index
    %128 = vector.load %arg6[%c2_136, %c0_137, %c0_138, %c0_139, %c0_140] : memref<4x1x9x9x128xf32, #tpu.memory_space<vmem>>, vector<1x1x7x9x128xf32>
    %129 = vector.shape_cast %128 : vector<1x1x7x9x128xf32> to vector<1x7x9x128xf32>
    %130 = vector.broadcast %127 : vector<1x1x1x128xf32> to vector<1x7x9x128xf32>
    %131 = arith.mulf %129, %130 : vector<1x7x9x128xf32>
    %132 = arith.addf %124, %131 : vector<1x7x9x128xf32>
    %c1_141 = arith.constant 1 : index
    %c3_142 = arith.constant 3 : index
    %c0_143 = arith.constant 0 : index
    %133 = vector.load %arg2[%c1_141, %c3_142, %c0_143] : memref<5x5x128xf32, #tpu.memory_space<vmem>>, vector<1x1x128xf32>
    %134 = vector.shape_cast %133 : vector<1x1x128xf32> to vector<128xf32>
    %135 = vector.shape_cast %134 : vector<128xf32> to vector<1x1x1x128xf32>
    %c3_144 = arith.constant 3 : index
    %c0_145 = arith.constant 0 : index
    %c0_146 = arith.constant 0 : index
    %c0_147 = arith.constant 0 : index
    %c0_148 = arith.constant 0 : index
    %136 = vector.load %arg6[%c3_144, %c0_145, %c0_146, %c0_147, %c0_148] : memref<4x1x9x9x128xf32, #tpu.memory_space<vmem>>, vector<1x1x7x9x128xf32>
    %137 = vector.shape_cast %136 : vector<1x1x7x9x128xf32> to vector<1x7x9x128xf32>
    %138 = vector.broadcast %135 : vector<1x1x1x128xf32> to vector<1x7x9x128xf32>
    %139 = arith.mulf %137, %138 : vector<1x7x9x128xf32>
    %140 = arith.addf %132, %139 : vector<1x7x9x128xf32>
    %c2_149 = arith.constant 2 : index
    %c2_150 = arith.constant 2 : index
    %c0_151 = arith.constant 0 : index
    %141 = vector.load %arg2[%c2_149, %c2_150, %c0_151] : memref<5x5x128xf32, #tpu.memory_space<vmem>>, vector<1x1x128xf32>
    %142 = vector.shape_cast %141 : vector<1x1x128xf32> to vector<128xf32>
    %143 = vector.shape_cast %142 : vector<128xf32> to vector<1x1x1x128xf32>
    %c0_152 = arith.constant 0 : index
    %c0_153 = arith.constant 0 : index
    %c1_154 = arith.constant 1 : index
    %c0_155 = arith.constant 0 : index
    %c0_156 = arith.constant 0 : index
    %144 = vector.load %arg6[%c0_152, %c0_153, %c1_154, %c0_155, %c0_156] : memref<4x1x9x9x128xf32, #tpu.memory_space<vmem>>, vector<1x1x7x9x128xf32>
    %145 = vector.shape_cast %144 : vector<1x1x7x9x128xf32> to vector<1x7x9x128xf32>
    %146 = vector.broadcast %143 : vector<1x1x1x128xf32> to vector<1x7x9x128xf32>
    %147 = arith.mulf %145, %146 : vector<1x7x9x128xf32>
    %148 = arith.addf %140, %147 : vector<1x7x9x128xf32>
    %c2_157 = arith.constant 2 : index
    %c3_158 = arith.constant 3 : index
    %c0_159 = arith.constant 0 : index
    %149 = vector.load %arg2[%c2_157, %c3_158, %c0_159] : memref<5x5x128xf32, #tpu.memory_space<vmem>>, vector<1x1x128xf32>
    %150 = vector.shape_cast %149 : vector<1x1x128xf32> to vector<128xf32>
    %151 = vector.shape_cast %150 : vector<128xf32> to vector<1x1x1x128xf32>
    %c1_160 = arith.constant 1 : index
    %c0_161 = arith.constant 0 : index
    %c1_162 = arith.constant 1 : index
    %c0_163 = arith.constant 0 : index
    %c0_164 = arith.constant 0 : index
    %152 = vector.load %arg6[%c1_160, %c0_161, %c1_162, %c0_163, %c0_164] : memref<4x1x9x9x128xf32, #tpu.memory_space<vmem>>, vector<1x1x7x9x128xf32>
    %153 = vector.shape_cast %152 : vector<1x1x7x9x128xf32> to vector<1x7x9x128xf32>
    %154 = vector.broadcast %151 : vector<1x1x1x128xf32> to vector<1x7x9x128xf32>
    %155 = arith.mulf %153, %154 : vector<1x7x9x128xf32>
    %156 = arith.addf %148, %155 : vector<1x7x9x128xf32>
    %c3_165 = arith.constant 3 : index
    %c2_166 = arith.constant 2 : index
    %c0_167 = arith.constant 0 : index
    %157 = vector.load %arg2[%c3_165, %c2_166, %c0_167] : memref<5x5x128xf32, #tpu.memory_space<vmem>>, vector<1x1x128xf32>
    %158 = vector.shape_cast %157 : vector<1x1x128xf32> to vector<128xf32>
    %159 = vector.shape_cast %158 : vector<128xf32> to vector<1x1x1x128xf32>
    %c2_168 = arith.constant 2 : index
    %c0_169 = arith.constant 0 : index
    %c1_170 = arith.constant 1 : index
    %c0_171 = arith.constant 0 : index
    %c0_172 = arith.constant 0 : index
    %160 = vector.load %arg6[%c2_168, %c0_169, %c1_170, %c0_171, %c0_172] : memref<4x1x9x9x128xf32, #tpu.memory_space<vmem>>, vector<1x1x7x9x128xf32>
    %161 = vector.shape_cast %160 : vector<1x1x7x9x128xf32> to vector<1x7x9x128xf32>
    %162 = vector.broadcast %159 : vector<1x1x1x128xf32> to vector<1x7x9x128xf32>
    %163 = arith.mulf %161, %162 : vector<1x7x9x128xf32>
    %164 = arith.addf %156, %163 : vector<1x7x9x128xf32>
    %c3_173 = arith.constant 3 : index
    %c3_174 = arith.constant 3 : index
    %c0_175 = arith.constant 0 : index
    %165 = vector.load %arg2[%c3_173, %c3_174, %c0_175] : memref<5x5x128xf32, #tpu.memory_space<vmem>>, vector<1x1x128xf32>
    %166 = vector.shape_cast %165 : vector<1x1x128xf32> to vector<128xf32>
    %167 = vector.shape_cast %166 : vector<128xf32> to vector<1x1x1x128xf32>
    %c3_176 = arith.constant 3 : index
    %c0_177 = arith.constant 0 : index
    %c1_178 = arith.constant 1 : index
    %c0_179 = arith.constant 0 : index
    %c0_180 = arith.constant 0 : index
    %168 = vector.load %arg6[%c3_176, %c0_177, %c1_178, %c0_179, %c0_180] : memref<4x1x9x9x128xf32, #tpu.memory_space<vmem>>, vector<1x1x7x9x128xf32>
    %169 = vector.shape_cast %168 : vector<1x1x7x9x128xf32> to vector<1x7x9x128xf32>
    %170 = vector.broadcast %167 : vector<1x1x1x128xf32> to vector<1x7x9x128xf32>
    %171 = arith.mulf %169, %170 : vector<1x7x9x128xf32>
    %172 = arith.addf %164, %171 : vector<1x7x9x128xf32>
    %c4_181 = arith.constant 4 : index
    %c2_182 = arith.constant 2 : index
    %c0_183 = arith.constant 0 : index
    %173 = vector.load %arg2[%c4_181, %c2_182, %c0_183] : memref<5x5x128xf32, #tpu.memory_space<vmem>>, vector<1x1x128xf32>
    %174 = vector.shape_cast %173 : vector<1x1x128xf32> to vector<128xf32>
    %175 = vector.shape_cast %174 : vector<128xf32> to vector<1x1x1x128xf32>
    %c0_184 = arith.constant 0 : index
    %c0_185 = arith.constant 0 : index
    %c2_186 = arith.constant 2 : index
    %c0_187 = arith.constant 0 : index
    %c0_188 = arith.constant 0 : index
    %176 = vector.load %arg6[%c0_184, %c0_185, %c2_186, %c0_187, %c0_188] : memref<4x1x9x9x128xf32, #tpu.memory_space<vmem>>, vector<1x1x7x9x128xf32>
    %177 = vector.shape_cast %176 : vector<1x1x7x9x128xf32> to vector<1x7x9x128xf32>
    %178 = vector.broadcast %175 : vector<1x1x1x128xf32> to vector<1x7x9x128xf32>
    %179 = arith.mulf %177, %178 : vector<1x7x9x128xf32>
    %180 = arith.addf %172, %179 : vector<1x7x9x128xf32>
    %c4_189 = arith.constant 4 : index
    %c3_190 = arith.constant 3 : index
    %c0_191 = arith.constant 0 : index
    %181 = vector.load %arg2[%c4_189, %c3_190, %c0_191] : memref<5x5x128xf32, #tpu.memory_space<vmem>>, vector<1x1x128xf32>
    %182 = vector.shape_cast %181 : vector<1x1x128xf32> to vector<128xf32>
    %183 = vector.shape_cast %182 : vector<128xf32> to vector<1x1x1x128xf32>
    %c1_192 = arith.constant 1 : index
    %c0_193 = arith.constant 0 : index
    %c2_194 = arith.constant 2 : index
    %c0_195 = arith.constant 0 : index
    %c0_196 = arith.constant 0 : index
    %184 = vector.load %arg6[%c1_192, %c0_193, %c2_194, %c0_195, %c0_196] : memref<4x1x9x9x128xf32, #tpu.memory_space<vmem>>, vector<1x1x7x9x128xf32>
    %185 = vector.shape_cast %184 : vector<1x1x7x9x128xf32> to vector<1x7x9x128xf32>
    %186 = vector.broadcast %183 : vector<1x1x1x128xf32> to vector<1x7x9x128xf32>
    %187 = arith.mulf %185, %186 : vector<1x7x9x128xf32>
    %188 = arith.addf %180, %187 : vector<1x7x9x128xf32>
    %189 = vector.extract_strided_slice %188 {offsets = [0, 0, 1, 0], sizes = [1, 7, 7, 128], strides = [1, 1, 1, 1]} : vector<1x7x9x128xf32> to vector<1x7x7x128xf32>
    %190 = arith.addf %107, %189 : vector<1x7x7x128xf32>
    %cst_197 = arith.constant 0.000000e+00 : f32
    %191 = vector.broadcast %cst_197 : f32 to vector<1x7x9x128xf32>
    %c0_198 = arith.constant 0 : index
    %c4_199 = arith.constant 4 : index
    %c0_200 = arith.constant 0 : index
    %192 = vector.load %arg2[%c0_198, %c4_199, %c0_200] : memref<5x5x128xf32, #tpu.memory_space<vmem>>, vector<1x1x128xf32>
    %193 = vector.shape_cast %192 : vector<1x1x128xf32> to vector<128xf32>
    %194 = vector.shape_cast %193 : vector<128xf32> to vector<1x1x1x128xf32>
    %c0_201 = arith.constant 0 : index
    %c0_202 = arith.constant 0 : index
    %c0_203 = arith.constant 0 : index
    %c0_204 = arith.constant 0 : index
    %c0_205 = arith.constant 0 : index
    %195 = vector.load %arg6[%c0_201, %c0_202, %c0_203, %c0_204, %c0_205] : memref<4x1x9x9x128xf32, #tpu.memory_space<vmem>>, vector<1x1x7x9x128xf32>
    %196 = vector.shape_cast %195 : vector<1x1x7x9x128xf32> to vector<1x7x9x128xf32>
    %197 = vector.broadcast %194 : vector<1x1x1x128xf32> to vector<1x7x9x128xf32>
    %198 = arith.mulf %196, %197 : vector<1x7x9x128xf32>
    %199 = arith.addf %191, %198 : vector<1x7x9x128xf32>
    %c1_206 = arith.constant 1 : index
    %c4_207 = arith.constant 4 : index
    %c0_208 = arith.constant 0 : index
    %200 = vector.load %arg2[%c1_206, %c4_207, %c0_208] : memref<5x5x128xf32, #tpu.memory_space<vmem>>, vector<1x1x128xf32>
    %201 = vector.shape_cast %200 : vector<1x1x128xf32> to vector<128xf32>
    %202 = vector.shape_cast %201 : vector<128xf32> to vector<1x1x1x128xf32>
    %c2_209 = arith.constant 2 : index
    %c0_210 = arith.constant 0 : index
    %c0_211 = arith.constant 0 : index
    %c0_212 = arith.constant 0 : index
    %c0_213 = arith.constant 0 : index
    %203 = vector.load %arg6[%c2_209, %c0_210, %c0_211, %c0_212, %c0_213] : memref<4x1x9x9x128xf32, #tpu.memory_space<vmem>>, vector<1x1x7x9x128xf32>
    %204 = vector.shape_cast %203 : vector<1x1x7x9x128xf32> to vector<1x7x9x128xf32>
    %205 = vector.broadcast %202 : vector<1x1x1x128xf32> to vector<1x7x9x128xf32>
    %206 = arith.mulf %204, %205 : vector<1x7x9x128xf32>
    %207 = arith.addf %199, %206 : vector<1x7x9x128xf32>
    %c2_214 = arith.constant 2 : index
    %c4_215 = arith.constant 4 : index
    %c0_216 = arith.constant 0 : index
    %208 = vector.load %arg2[%c2_214, %c4_215, %c0_216] : memref<5x5x128xf32, #tpu.memory_space<vmem>>, vector<1x1x128xf32>
    %209 = vector.shape_cast %208 : vector<1x1x128xf32> to vector<128xf32>
    %210 = vector.shape_cast %209 : vector<128xf32> to vector<1x1x1x128xf32>
    %c0_217 = arith.constant 0 : index
    %c0_218 = arith.constant 0 : index
    %c1_219 = arith.constant 1 : index
    %c0_220 = arith.constant 0 : index
    %c0_221 = arith.constant 0 : index
    %211 = vector.load %arg6[%c0_217, %c0_218, %c1_219, %c0_220, %c0_221] : memref<4x1x9x9x128xf32, #tpu.memory_space<vmem>>, vector<1x1x7x9x128xf32>
    %212 = vector.shape_cast %211 : vector<1x1x7x9x128xf32> to vector<1x7x9x128xf32>
    %213 = vector.broadcast %210 : vector<1x1x1x128xf32> to vector<1x7x9x128xf32>
    %214 = arith.mulf %212, %213 : vector<1x7x9x128xf32>
    %215 = arith.addf %207, %214 : vector<1x7x9x128xf32>
    %c3_222 = arith.constant 3 : index
    %c4_223 = arith.constant 4 : index
    %c0_224 = arith.constant 0 : index
    %216 = vector.load %arg2[%c3_222, %c4_223, %c0_224] : memref<5x5x128xf32, #tpu.memory_space<vmem>>, vector<1x1x128xf32>
    %217 = vector.shape_cast %216 : vector<1x1x128xf32> to vector<128xf32>
    %218 = vector.shape_cast %217 : vector<128xf32> to vector<1x1x1x128xf32>
    %c2_225 = arith.constant 2 : index
    %c0_226 = arith.constant 0 : index
    %c1_227 = arith.constant 1 : index
    %c0_228 = arith.constant 0 : index
    %c0_229 = arith.constant 0 : index
    %219 = vector.load %arg6[%c2_225, %c0_226, %c1_227, %c0_228, %c0_229] : memref<4x1x9x9x128xf32, #tpu.memory_space<vmem>>, vector<1x1x7x9x128xf32>
    %220 = vector.shape_cast %219 : vector<1x1x7x9x128xf32> to vector<1x7x9x128xf32>
    %221 = vector.broadcast %218 : vector<1x1x1x128xf32> to vector<1x7x9x128xf32>
    %222 = arith.mulf %220, %221 : vector<1x7x9x128xf32>
    %223 = arith.addf %215, %222 : vector<1x7x9x128xf32>
    %c4_230 = arith.constant 4 : index
    %c4_231 = arith.constant 4 : index
    %c0_232 = arith.constant 0 : index
    %224 = vector.load %arg2[%c4_230, %c4_231, %c0_232] : memref<5x5x128xf32, #tpu.memory_space<vmem>>, vector<1x1x128xf32>
    %225 = vector.shape_cast %224 : vector<1x1x128xf32> to vector<128xf32>
    %226 = vector.shape_cast %225 : vector<128xf32> to vector<1x1x1x128xf32>
    %c0_233 = arith.constant 0 : index
    %c0_234 = arith.constant 0 : index
    %c2_235 = arith.constant 2 : index
    %c0_236 = arith.constant 0 : index
    %c0_237 = arith.constant 0 : index
    %227 = vector.load %arg6[%c0_233, %c0_234, %c2_235, %c0_236, %c0_237] : memref<4x1x9x9x128xf32, #tpu.memory_space<vmem>>, vector<1x1x7x9x128xf32>
    %228 = vector.shape_cast %227 : vector<1x1x7x9x128xf32> to vector<1x7x9x128xf32>
    %229 = vector.broadcast %226 : vector<1x1x1x128xf32> to vector<1x7x9x128xf32>
    %230 = arith.mulf %228, %229 : vector<1x7x9x128xf32>
    %231 = arith.addf %223, %230 : vector<1x7x9x128xf32>
    %232 = vector.extract_strided_slice %231 {offsets = [0, 0, 2, 0], sizes = [1, 7, 7, 128], strides = [1, 1, 1, 1]} : vector<1x7x9x128xf32> to vector<1x7x7x128xf32>
    %233 = arith.addf %190, %232 : vector<1x7x7x128xf32>
    %cst_238 = arith.constant dense<0.000000e+00> : vector<1x7x128xf32>
    %234 = vector.multi_reduction <add>, %233, %cst_238 [2] : vector<1x7x7x128xf32> to vector<1x7x128xf32>
    %235 = vector.shape_cast %234 : vector<1x7x128xf32> to vector<1x7x1x128xf32>
    %cst_239 = arith.constant dense<0.000000e+00> : vector<1x1x128xf32>
    %236 = vector.multi_reduction <add>, %235, %cst_239 [1] : vector<1x7x1x128xf32> to vector<1x1x128xf32>
    %237 = vector.shape_cast %236 : vector<1x1x128xf32> to vector<1x1x1x128xf32>
    %cst_240 = arith.constant dense<0.000000e+00> : vector<1x1x128xf32>
    %238 = vector.multi_reduction <add>, %237, %cst_240 [0] : vector<1x1x1x128xf32> to vector<1x1x128xf32>
    %239 = vector.shape_cast %238 : vector<1x1x128xf32> to vector<1x1x1x128xf32>
    %240 = arith.mulf %233, %233 : vector<1x7x7x128xf32>
    %cst_241 = arith.constant dense<0.000000e+00> : vector<1x7x128xf32>
    %241 = vector.multi_reduction <add>, %240, %cst_241 [2] : vector<1x7x7x128xf32> to vector<1x7x128xf32>
    %242 = vector.shape_cast %241 : vector<1x7x128xf32> to vector<1x7x1x128xf32>
    %cst_242 = arith.constant dense<0.000000e+00> : vector<1x1x128xf32>
    %243 = vector.multi_reduction <add>, %242, %cst_242 [1] : vector<1x7x1x128xf32> to vector<1x1x128xf32>
    %244 = vector.shape_cast %243 : vector<1x1x128xf32> to vector<1x1x1x128xf32>
    %cst_243 = arith.constant dense<0.000000e+00> : vector<1x1x128xf32>
    %245 = vector.multi_reduction <add>, %244, %cst_243 [0] : vector<1x1x1x128xf32> to vector<1x1x128xf32>
    %246 = vector.shape_cast %245 : vector<1x1x128xf32> to vector<1x1x1x128xf32>
    %cst_244 = arith.constant 0.0204081628 : f32
    %247 = vector.broadcast %cst_244 : f32 to vector<1x1x1x128xf32>
    %248 = arith.mulf %239, %247 : vector<1x1x1x128xf32>
    %cst_245 = arith.constant 0.0204081628 : f32
    %249 = vector.broadcast %cst_245 : f32 to vector<1x1x1x128xf32>
    %250 = arith.mulf %246, %249 : vector<1x1x1x128xf32>
    %251 = arith.mulf %248, %248 : vector<1x1x1x128xf32>
    %252 = arith.subf %250, %251 : vector<1x1x1x128xf32>
    %cst_246 = arith.constant 0.000000e+00 : f32
    %253 = vector.broadcast %cst_246 : f32 to vector<1x1x1x128xf32>
    %254 = arith.maximumf %252, %253 : vector<1x1x1x128xf32>
    %cst_247 = arith.constant 9.99999974E-6 : f32
    %255 = vector.broadcast %cst_247 : f32 to vector<1x1x1x128xf32>
    %256 = arith.addf %254, %255 : vector<1x1x1x128xf32>
    %257 = math.rsqrt %256 : vector<1x1x1x128xf32>
    %c0_248 = arith.constant 0 : index
    %c0_249 = arith.constant 0 : index
    %258 = vector.load %arg3[%c0_248, %c0_249] : memref<1x128xf32, #tpu.memory_space<vmem>>, vector<1x128xf32>
    %259 = vector.shape_cast %258 : vector<1x128xf32> to vector<1x1x1x128xf32>
    %260 = arith.mulf %257, %259 : vector<1x1x1x128xf32>
    %c0_250 = arith.constant 0 : index
    %c0_251 = arith.constant 0 : index
    %261 = vector.load %arg4[%c0_250, %c0_251] : memref<1x128xf32, #tpu.memory_space<vmem>>, vector<1x128xf32>
    %262 = vector.shape_cast %261 : vector<1x128xf32> to vector<1x1x1x128xf32>
    %263 = arith.mulf %248, %260 : vector<1x1x1x128xf32>
    %264 = arith.subf %262, %263 : vector<1x1x1x128xf32>
    %265 = vector.broadcast %260 : vector<1x1x1x128xf32> to vector<1x7x7x128xf32>
    %266 = arith.mulf %233, %265 : vector<1x7x7x128xf32>
    %267 = vector.broadcast %264 : vector<1x1x1x128xf32> to vector<1x7x7x128xf32>
    %268 = arith.addf %266, %267 : vector<1x7x7x128xf32>
    %c0_252 = arith.constant 0 : index
    %c0_253 = arith.constant 0 : index
    %c0_254 = arith.constant 0 : index
    %c0_255 = arith.constant 0 : index
    %269 = vector.load %arg5[%c0_252, %c0_253, %c0_254, %c0_255] : memref<1x7x7x128xf32, #tpu.memory_space<vmem>>, vector<1x7x7x128xf32>
    tpu.vector_store %arg5[%c0_252, %c0_253, %c0_254, %c0_255], %268 {strides = array<i32>} : memref<1x7x7x128xf32, #tpu.memory_space<vmem>>, vector<1x7x7x128xf32>,
    return
  }
  func.func @transform_0(%arg0: i32) -> (i32, i32, i32, i32) {
    %c0_i32 = arith.constant 0 : i32
    %c0_i32_0 = arith.constant 0 : i32
    %c0_i32_1 = arith.constant 0 : i32
    %c0_i32_2 = arith.constant 0 : i32
    return %c0_i32, %c0_i32_0, %c0_i32_1, %arg0 : i32, i32, i32, i32
  }
  func.func @transform_1(%arg0: i32) -> (i32, i32, i32) {
    %c0_i32 = arith.constant 0 : i32
    %c0_i32_0 = arith.constant 0 : i32
    %c0_i32_1 = arith.constant 0 : i32
    return %c0_i32, %c0_i32_0, %arg0 : i32, i32, i32
  }
  func.func @transform_2(%arg0: i32) -> (i32, i32) {
    %c0_i32 = arith.constant 0 : i32
    %c0_i32_0 = arith.constant 0 : i32
    return %c0_i32, %arg0 : i32, i32
  }
  func.func @transform_3(%arg0: i32) -> (i32, i32) {
    %c0_i32 = arith.constant 0 : i32
    %c0_i32_0 = arith.constant 0 : i32
    return %c0_i32, %arg0 : i32, i32
  }
  func.func @transform_4(%arg0: i32) -> (i32, i32, i32, i32) {
    %c0_i32 = arith.constant 0 : i32
    %c0_i32_0 = arith.constant 0 : i32
    %c0_i32_1 = arith.constant 0 : i32
    %c0_i32_2 = arith.constant 0 : i32
    return %c0_i32, %c0_i32_0, %c0_i32_1, %arg0 : i32, i32, i32, i32
  }
}

</mosaic_0001>

<llo_original>
// kernel: m_forward.1
$region0: #{m_forward.1}
  #allocation0 [shape = 'u32[]', space=smem, size = 0x4, offset = 0x4, fixed_abs, tag = 'smem constant byte address 0x4 - core index']
  #allocation1 [shape = 'u32[144,128]{1,0:T(1,128)}', space=vmem, size = 0x12000, scoped, tag = 'internal scratch']
  #allocation2 [shape = 'f32[4,1,9,9,128]{4,3,2,1,0:T(8,128)}', space=vmem, size = 0x48000, scoped, tag = 'scratch operand']
  %s0 = inlined_call_operand.vmem [shape: f32[1,18,18,640], index: 0, kind: input, shape index: {}]
  %s1 = inlined_call_operand.vmem [shape: f32[5,5,640], index: 1, kind: input, shape index: {}]
  %s2 = inlined_call_operand.vmem [shape: f32[1,640], index: 2, kind: input, shape index: {}]
  %s3 = inlined_call_operand.vmem [shape: f32[1,640], index: 3, kind: input, shape index: {}]
  %s4 = inlined_call_operand.vmem [shape: f32[1,7,7,640], index: 4, kind: output, shape index: {}]
  %s5 = sld [smem:[#allocation0]]
  $region159: #{m_forward.1} parent=0
    _
  %s7 = ssub.s32 1, %s5
  %s8 = scalar_select 0, %s7, %s5
  $region1: #{m_forward.1} parent=0
    #allocation3 [shape = 'u8[442368]{0}', space=vmem, size = 0x6c000, scoped, tag = 'input window, operand 0']
    #allocation4 [shape = 'u8[40960]{0}', space=vmem, size = 0xa000, scoped, tag = 'input window, operand 1']
    #allocation5 [shape = 'u8[57344]{0}', space=vmem, size = 0xe000, scoped, tag = 'output window, operand 0']
    loop: start=0, step=1, limit=7
    $region2: #{m_forward.1} parent=1 // loop_pre_header
      _
    $region3: #{m_forward.1} parent=1 // loop_header
      %s10 = sphi 0, %s14
      %p11 = scmp.ge.s32.totalorder %s10, 7
      %s20 = sphi 0, %s22
      %s23 = sphi 0, %s20
      %s24 = sphi 0, %s23
      %s40 = sphi 0, %s24
      %s46 = sphi 0, %s48
      %s49 = sphi 0, %s46
      %s50 = sphi 0, %s49
      %s66 = sphi 0, %s50
      %s72 = sphi 0, %s74
      %s75 = sphi 0, %s72
      %s76 = sphi 0, %s75
      %s92 = sphi 0, %s76
      %s98 = sphi 0, %s100
      %s101 = sphi 0, %s98
      %s102 = sphi 0, %s101
      %s118 = sphi 0, %s102
      %s124 = sphi 0, %s126
      %s127 = sphi 0, %s124
      %s128 = sphi 0, %s127
      %s144 = sphi 0, %s128
    $region4: #{m_forward.1} parent=1 // loop_header_branch
      %13 = sbr.rel (%p11) target = $region8
    $region5: #{m_forward.1} parent=1 // loop_body
      %s15 = ssub.s32 %s10, 1
      %s16 = ssub.s32 %s10, 2
      %s17 = sadd.s32 %s10, 1
      %s18 = ssub.s32 %s10, %s17
      %p19 = scmp.eq.s32.totalorder %s18, 0
      %s21 = sadd.s32 %s20, 1
      %s22 = scalar_select %p19, %s20, %s21
      %p25 = pneg %p19
      %p26 = scmp.eq.s32.totalorder %s10, 4
      %p27 = por %p25, %p26
      %p28 = scmp.ne.s32.totalorder %s20, %s23
      %p29 = scmp.eq.s32.totalorder %s10, 0
      %p30 = por %p28, %p29
      %p31 = scmp.ne.s32.totalorder %s20, %s23
      %p32 = scmp.eq.s32.totalorder %s15, 4
      %p33 = por %p31, %p32
      %p34 = scmp.ne.s32.totalorder %s23, %s24
      %p35 = scmp.eq.s32.totalorder %s15, 0
      %p36 = por %p34, %p35
      %p37 = scmp.ne.s32.totalorder %s23, %s24
      %p38 = scmp.eq.s32.totalorder %s16, 4
      %p39 = por %p37, %p38
      %p41 = scmp.ne.s32.totalorder %s24, %s40
      %p42 = scmp.eq.s32.totalorder %s16, 0
      %p43 = por %p41, %p42
      %s44 = ssub.s32 %s10, %s17
      %p45 = scmp.eq.s32.totalorder %s44, 0
      %s47 = sadd.s32 %s46, 1
      %s48 = scalar_select %p45, %s46, %s47
      %p51 = pneg %p45
      %p52 = scmp.eq.s32.totalorder %s10, 4
      %p53 = por %p51, %p52
      %p54 = scmp.ne.s32.totalorder %s46, %s49
      %p55 = scmp.eq.s32.totalorder %s10, 0
      %p56 = por %p54, %p55
      %p57 = scmp.ne.s32.totalorder %s46, %s49
      %p58 = scmp.eq.s32.totalorder %s15, 4
      %p59 = por %p57, %p58
      %p60 = scmp.ne.s32.totalorder %s49, %s50
      %p61 = scmp.eq.s32.totalorder %s15, 0
      %p62 = por %p60, %p61
      %p63 = scmp.ne.s32.totalorder %s49, %s50
      %p64 = scmp.eq.s32.totalorder %s16, 4
      %p65 = por %p63, %p64
      %p67 = scmp.ne.s32.totalorder %s50, %s66
      %p68 = scmp.eq.s32.totalorder %s16, 0
      %p69 = por %p67, %p68
      %s70 = ssub.s32 %s10, %s17
      %p71 = scmp.eq.s32.totalorder %s70, 0
      %s73 = sadd.s32 %s72, 1
      %s74 = scalar_select %p71, %s72, %s73
      %p77 = pneg %p71
      %p78 = scmp.eq.s32.totalorder %s10, 4
      %p79 = por %p77, %p78
      %p80 = scmp.ne.s32.totalorder %s72, %s75
      %p81 = scmp.eq.s32.totalorder %s10, 0
      %p82 = por %p80, %p81
      %p83 = scmp.ne.s32.totalorder %s72, %s75
      %p84 = scmp.eq.s32.totalorder %s15, 4
      %p85 = por %p83, %p84
      %p86 = scmp.ne.s32.totalorder %s75, %s76
      %p87 = scmp.eq.s32.totalorder %s15, 0
      %p88 = por %p86, %p87
      %p89 = scmp.ne.s32.totalorder %s75, %s76
      %p90 = scmp.eq.s32.totalorder %s16, 4
      %p91 = por %p89, %p90
      %p93 = scmp.ne.s32.totalorder %s76, %s92
      %p94 = scmp.eq.s32.totalorder %s16, 0
      %p95 = por %p93, %p94
      %s96 = ssub.s32 %s10, %s17
      %p97 = scmp.eq.s32.totalorder %s96, 0
      %s99 = sadd.s32 %s98, 1
      %s100 = scalar_select %p97, %s98, %s99
      %p103 = pneg %p97
      %p104 = scmp.eq.s32.totalorder %s10, 4
      %p105 = por %p103, %p104
      %p106 = scmp.ne.s32.totalorder %s98, %s101
      %p107 = scmp.eq.s32.totalorder %s10, 0
      %p108 = por %p106, %p107
      %p109 = scmp.ne.s32.totalorder %s98, %s101
      %p110 = scmp.eq.s32.totalorder %s15, 4
      %p111 = por %p109, %p110
      %p112 = scmp.ne.s32.totalorder %s101, %s102
      %p113 = scmp.eq.s32.totalorder %s15, 0
      %p114 = por %p112, %p113
      %p115 = scmp.ne.s32.totalorder %s101, %s102
      %p116 = scmp.eq.s32.totalorder %s16, 4
      %p117 = por %p115, %p116
      %p119 = scmp.ne.s32.totalorder %s102, %s118
      %p120 = scmp.eq.s32.totalorder %s16, 0
      %p121 = por %p119, %p120
      %s122 = ssub.s32 %s10, %s17
      %p123 = scmp.eq.s32.totalorder %s122, 0
      %s125 = sadd.s32 %s124, 1
      %s126 = scalar_select %p123, %s124, %s125
      %p129 = pneg %p123
      %p130 = scmp.eq.s32.totalorder %s10, 4
      %p131 = por %p129, %p130
      %p132 = scmp.ne.s32.totalorder %s124, %s127
      %p133 = scmp.eq.s32.totalorder %s10, 0
      %p134 = por %p132, %p133
      %p135 = scmp.ne.s32.totalorder %s124, %s127
      %p136 = scmp.eq.s32.totalorder %s15, 4
      %p137 = por %p135, %p136
      %p138 = scmp.ne.s32.totalorder %s127, %s128
      %p139 = scmp.eq.s32.totalorder %s15, 0
      %p140 = por %p138, %p139
      %p141 = scmp.ne.s32.totalorder %s127, %s128
      %p142 = scmp.eq.s32.totalorder %s16, 4
      %p143 = por %p141, %p142
      %p145 = scmp.ne.s32.totalorder %s128, %s144
      %p146 = scmp.eq.s32.totalorder %s16, 0
      %p147 = por %p145, %p146
      %p148 = scmp.le.s32.totalorder 1, %s10
      %p149 = scmp.lt.s32.totalorder %s10, 6
      %p150 = pnand %p148, %p149
      %p151 = pneg %p150
      // Predicated region
      $region9: #{m_forward.1} parent=5 // pred_check
        _
      $region10: #{m_forward.1} parent=5 // pred_check_branch
        %153 = sbr.rel (%p150) target = $region12
      $region11: #{m_forward.1} parent=5 // pred_region
        %s154 = ssub.s32 %s10, 1
      $region12: #{m_forward.1} parent=5 // pred_fallthru
        _
      %p155 = scmp.lt.s32.totalorder %s10, 5
      // Predicated region
      $region13: #{m_forward.1} parent=5 // pred_check
        %p156 = pneg %p155
      $region14: #{m_forward.1} parent=5 // pred_check_branch
        %158 = sbr.rel (%p156) target = $region16
      $region15: #{m_forward.1} parent=5 // pred_region
        // Predicated region
        $region17: #{m_forward.1} parent=15 // pred_check
          %p159 = pneg %p30
        $region18: #{m_forward.1} parent=15 // pred_check_branch
          %161 = sbr.rel (%p159) target = $region20
        $region19: #{m_forward.1} parent=15 // pred_region
          %s162 = sand.u32 %s20, 1
          %s163 = sand.u32 %s20, 1
          %s164 = smul.addr %s163, 432
          %s165 = scalar_lea.vmem [#allocation3], %s164
          %s166 = smul.addr %s10, 8
          %s167 = scalar_lea.vmem %s0, %s166
          // Predicated region
          $region21: #{m_forward.1} parent=19 // pred_check
            _
          $region22: #{m_forward.1} parent=19 // pred_check_branch
            %169 = sbr.rel (0) target = $region24
          $region23: #{m_forward.1} parent=19 // pred_region
            // Predicated region
            $region25: #{m_forward.1} parent=23 // pred_check
              _
            $region26: #{m_forward.1} parent=23 // pred_check_branch
              %171 = sbr.rel (0) target = $region28
            $region27: #{m_forward.1} parent=23 // pred_region
              // Predicated region
              $region40: #{m_forward.1} parent=27 // pred_check
                _
              $region41: #{m_forward.1} parent=27 // pred_check_branch
                %292 = sbr.rel (0) target = $region43
              $region42: #{m_forward.1} parent=27 // pred_region
                loop: start=0, step=1, limit=1
                $region44: #{m_forward.1} parent=42 // loop_pre_header
                  _
                $region45: #{m_forward.1} parent=42 // loop_header
                  %s294 = sphi 0, %s298
                  %p295 = scmp.ge.s32.totalorder %s294, 1
                  %s299 = sphi %s167, %s167
                  %s300 = sphi %s165, %s165
                $region46: #{m_forward.1} parent=42 // loop_header_branch
                  %297 = sbr.rel (%p295) target = $region50
                $region47: #{m_forward.1} parent=42 // loop_body
                  %v301 = vld [vmem:[%s299] sm:$0xff]
                  %302 = vst [vmem:[%s300] sm:$0xff] %v301
                  %v303 = vld [vmem:[%s299 + $0x28] sm:$0xff]
                  %304 = vst [vmem:[%s300 + $0x8] sm:$0xff] %v303
                  %v305 = vld [vmem:[%s299 + $0x50] sm:$0xff]
                  %306 = vst [vmem:[%s300 + $0x10] sm:$0xff] %v305
                  %v307 = vld [vmem:[%s299 + $0x78] sm:$0xff]
                  %308 = vst [vmem:[%s300 + $0x18] sm:$0xff] %v307
                  %v309 = vld [vmem:[%s299 + $0xa0] sm:$0xff]
                  %310 = vst [vmem:[%s300 + $0x20] sm:$0xff] %v309
                  %v311 = vld [vmem:[%s299 + $0xc8] sm:$0xff]
                  %312 = vst [vmem:[%s300 + $0x28] sm:$0xff] %v311
                  %v313 = vld [vmem:[%s299 + $0xf0] sm:$0xff]
                  %314 = vst [vmem:[%s300 + $0x30] sm:$0xff] %v313
                  %v315 = vld [vmem:[%s299 + $0x118] sm:$0xff]
                  %316 = vst [vmem:[%s300 + $0x38] sm:$0xff] %v315
                  %v317 = vld [vmem:[%s299 + $0x140] sm:$0xff]
                  %318 = vst [vmem:[%s300 + $0x40] sm:$0xff] %v317
                  %v319 = vld [vmem:[%s299 + $0x168] sm:$0xff]
                  %320 = vst [vmem:[%s300 + $0x48] sm:$0xff] %v319
                  %v321 = vld [vmem:[%s299 + $0x190] sm:$0xff]
                  %322 = vst [vmem:[%s300 + $0x50] sm:$0xff] %v321
                  %v323 = vld [vmem:[%s299 + $0x1b8] sm:$0xff]
                  %324 = vst [vmem:[%s300 + $0x58] sm:$0xff] %v323
                  %v325 = vld [vmem:[%s299 + $0x1e0] sm:$0xff]
                  %326 = vst [vmem:[%s300 + $0x60] sm:$0xff] %v325
                  %v327 = vld [vmem:[%s299 + $0x208] sm:$0xff]
                  %328 = vst [vmem:[%s300 + $0x68] sm:$0xff] %v327
                  %v329 = vld [vmem:[%s299 + $0x230] sm:$0xff]
                  %330 = vst [vmem:[%s300 + $0x70] sm:$0xff] %v329
                  %v331 = vld [vmem:[%s299 + $0x258] sm:$0xff]
                  %332 = vst [vmem:[%s300 + $0x78] sm:$0xff] %v331
                  %v333 = vld [vmem:[%s299 + $0x280] sm:$0xff]
                  %334 = vst [vmem:[%s300 + $0x80] sm:$0xff] %v333
                  %v335 = vld [vmem:[%s299 + $0x2a8] sm:$0xff]
                  %336 = vst [vmem:[%s300 + $0x88] sm:$0xff] %v335
                  %v337 = vld [vmem:[%s299 + $0x2d0] sm:$0xff]
                  %338 = vst [vmem:[%s300 + $0x90] sm:$0xff] %v337
                  %v339 = vld [vmem:[%s299 + $0x2f8] sm:$0xff]
                  %340 = vst [vmem:[%s300 + $0x98] sm:$0xff] %v339
                  %v341 = vld [vmem:[%s299 + $0x320] sm:$0xff]
                  %342 = vst [vmem:[%s300 + $0xa0] sm:$0xff] %v341
                  %v343 = vld [vmem:[%s299 + $0x348] sm:$0xff]
                  %344 = vst [vmem:[%s300 + $0xa8] sm:$0xff] %v343
                  %v345 = vld [vmem:[%s299 + $0x370] sm:$0xff]
                  %346 = vst [vmem:[%s300 + $0xb0] sm:$0xff] %v345
                  %v347 = vld [vmem:[%s299 + $0x398] sm:$0xff]
                  %348 = vst [vmem:[%s300 + $0xb8] sm:$0xff] %v347
                  %v349 = vld [vmem:[%s299 + $0x3c0] sm:$0xff]
                  %350 = vst [vmem:[%s300 + $0xc0] sm:$0xff] %v349
                  %v351 = vld [vmem:[%s299 + $0x3e8] sm:$0xff]
                  %352 = vst [vmem:[%s300 + $0xc8] sm:$0xff] %v351
                  %v353 = vld [vmem:[%s299 + $0x410] sm:$0xff]
                  %354 = vst [vmem:[%s300 + $0xd0] sm:$0xff] %v353
                  %v355 = vld [vmem:[%s299 + $0x438] sm:$0xff]
                  %356 = vst [vmem:[%s300 + $0xd8] sm:$0xff] %v355
                  %v357 = vld [vmem:[%s299 + $0x460] sm:$0xff]
                  %358 = vst [vmem:[%s300 + $0xe0] sm:$0xff] %v357
                  %v359 = vld [vmem:[%s299 + $0x488] sm:$0xff]
                  %360 = vst [vmem:[%s300 + $0xe8] sm:$0xff] %v359
                  %v361 = vld [vmem:[%s299 + $0x4b0] sm:$0xff]
                  %362 = vst [vmem:[%s300 + $0xf0] sm:$0xff] %v361
                  %v363 = vld [vmem:[%s299 + $0x4d8] sm:$0xff]
                  %364 = vst [vmem:[%s300 + $0xf8] sm:$0xff] %v363
                  %v365 = vld [vmem:[%s299 + $0x500] sm:$0xff]
                  %366 = vst [vmem:[%s300 + $0x100] sm:$0xff] %v365
                  %v367 = vld [vmem:[%s299 + $0x528] sm:$0xff]
                  %368 = vst [vmem:[%s300 + $0x108] sm:$0xff] %v367
                  %v369 = vld [vmem:[%s299 + $0x550] sm:$0xff]
                  %370 = vst [vmem:[%s300 + $0x110] sm:$0xff] %v369
                  %v371 = vld [vmem:[%s299 + $0x578] sm:$0xff]
                  %372 = vst [vmem:[%s300 + $0x118] sm:$0xff] %v371
                  %v373 = vld [vmem:[%s299 + $0x5a0] sm:$0xff]
                  %374 = vst [vmem:[%s300 + $0x120] sm:$0xff] %v373
                  %v375 = vld [vmem:[%s299 + $0x5c8] sm:$0xff]
                  %376 = vst [vmem:[%s300 + $0x128] sm:$0xff] %v375
                  %v377 = vld [vmem:[%s299 + $0x5f0] sm:$0xff]
                  %378 = vst [vmem:[%s300 + $0x130] sm:$0xff] %v377
                  %v379 = vld [vmem:[%s299 + $0x618] sm:$0xff]
                  %380 = vst [vmem:[%s300 + $0x138] sm:$0xff] %v379
                  %v381 = vld [vmem:[%s299 + $0x640] sm:$0xff]
                  %382 = vst [vmem:[%s300 + $0x140] sm:$0xff] %v381
                  %v383 = vld [vmem:[%s299 + $0x668] sm:$0xff]
                  %384 = vst [vmem:[%s300 + $0x148] sm:$0xff] %v383
                  %v385 = vld [vmem:[%s299 + $0x690] sm:$0xff]
                  %386 = vst [vmem:[%s300 + $0x150] sm:$0xff] %v385
                  %v387 = vld [vmem:[%s299 + $0x6b8] sm:$0xff]
                  %388 = vst [vmem:[%s300 + $0x158] sm:$0xff] %v387
                  %v389 = vld [vmem:[%s299 + $0x6e0] sm:$0xff]
                  %390 = vst [vmem:[%s300 + $0x160] sm:$0xff] %v389
                  %v391 = vld [vmem:[%s299 + $0x708] sm:$0xff]
                  %392 = vst [vmem:[%s300 + $0x168] sm:$0xff] %v391
                  %v393 = vld [vmem:[%s299 + $0x730] sm:$0xff]
                  %394 = vst [vmem:[%s300 + $0x170] sm:$0xff] %v393
                  %v395 = vld [vmem:[%s299 + $0x758] sm:$0xff]
                  %396 = vst [vmem:[%s300 + $0x178] sm:$0xff] %v395
                  %v397 = vld [vmem:[%s299 + $0x780] sm:$0xff]
                  %398 = vst [vmem:[%s300 + $0x180] sm:$0xff] %v397
                  %v399 = vld [vmem:[%s299 + $0x7a8] sm:$0xff]
                  %400 = vst [vmem:[%s300 + $0x188] sm:$0xff] %v399
                  %v401 = vld [vmem:[%s299 + $0x7d0] sm:$0xff]
                  %402 = vst [vmem:[%s300 + $0x190] sm:$0xff] %v401
                  %v403 = vld [vmem:[%s299 + $0x7f8] sm:$0xff]
                  %404 = vst [vmem:[%s300 + $0x198] sm:$0xff] %v403
                  %v405 = vld [vmem:[%s299 + $0x820] sm:$0xff]
                  %406 = vst [vmem:[%s300 + $0x1a0] sm:$0xff] %v405
                  %v407 = vld [vmem:[%s299 + $0x848] sm:$0xff]
                  %408 = vst [vmem:[%s300 + $0x1a8] sm:$0xff] %v407
                $region48: #{m_forward.1} parent=42 // loop_footer
                  %s298 = sadd.s32 1, %s294
                $region49: #{m_forward.1} parent=42 // loop_footer_branch
                  %293 = sbr.rel target = $region45
                $region50: #{m_forward.1} parent=42 // loop_exit
                  _
              $region43: #{m_forward.1} parent=27 // pred_fallthru
                _
              // Predicated region
              $region51: #{m_forward.1} parent=27 // pred_check
                _
              $region52: #{m_forward.1} parent=27 // pred_check_branch
                %410 = sbr.rel target = $region54
              $region53: #{m_forward.1} parent=27 // pred_region
                _
              $region54: #{m_forward.1} parent=27 // pred_fallthru
                _
            $region28: #{m_forward.1} parent=23 // pred_fallthru
              _
            // Predicated region
            $region29: #{m_forward.1} parent=23 // pred_check
              _
            $region30: #{m_forward.1} parent=23 // pred_check_branch
              %173 = sbr.rel target = $region32
            $region31: #{m_forward.1} parent=23 // pred_region
              loop: start=0, step=1, limit=1
              $region33: #{m_forward.1} parent=31 // loop_pre_header
                _
              $region34: #{m_forward.1} parent=31 // loop_header
                %s176 = sphi 0, %s180
                %p177 = scmp.ge.s32.totalorder %s176, 1
                %s181 = sphi %s167, %s167
                %s182 = sphi %s165, %s165
              $region35: #{m_forward.1} parent=31 // loop_header_branch
                %179 = sbr.rel (%p177) target = $region39
              $region36: #{m_forward.1} parent=31 // loop_body
                %v183 = vld [vmem:[%s181] sm:$0xff]
                %184 = vst [vmem:[%s182] sm:$0xff] %v183
                %v185 = vld [vmem:[%s181 + $0x28] sm:$0xff]
                %186 = vst [vmem:[%s182 + $0x8] sm:$0xff] %v185
                %v187 = vld [vmem:[%s181 + $0x50] sm:$0xff]
                %188 = vst [vmem:[%s182 + $0x10] sm:$0xff] %v187
                %v189 = vld [vmem:[%s181 + $0x78] sm:$0xff]
                %190 = vst [vmem:[%s182 + $0x18] sm:$0xff] %v189
                %v191 = vld [vmem:[%s181 + $0xa0] sm:$0xff]
                %192 = vst [vmem:[%s182 + $0x20] sm:$0xff] %v191
                %v193 = vld [vmem:[%s181 + $0xc8] sm:$0xff]
                %194 = vst [vmem:[%s182 + $0x28] sm:$0xff] %v193
                %v195 = vld [vmem:[%s181 + $0xf0] sm:$0xff]
                %196 = vst [vmem:[%s182 + $0x30] sm:$0xff] %v195
                %v197 = vld [vmem:[%s181 + $0x118] sm:$0xff]
                %198 = vst [vmem:[%s182 + $0x38] sm:$0xff] %v197
                %v199 = vld [vmem:[%s181 + $0x140] sm:$0xff]
                %200 = vst [vmem:[%s182 + $0x40] sm:$0xff] %v199
                %v201 = vld [vmem:[%s181 + $0x168] sm:$0xff]
                %202 = vst [vmem:[%s182 + $0x48] sm:$0xff] %v201
                %v203 = vld [vmem:[%s181 + $0x190] sm:$0xff]
                %204 = vst [vmem:[%s182 + $0x50] sm:$0xff] %v203
                %v205 = vld [vmem:[%s181 + $0x1b8] sm:$0xff]
                %206 = vst [vmem:[%s182 + $0x58] sm:$0xff] %v205
                %v207 = vld [vmem:[%s181 + $0x1e0] sm:$0xff]
                %208 = vst [vmem:[%s182 + $0x60] sm:$0xff] %v207
                %v209 = vld [vmem:[%s181 + $0x208] sm:$0xff]
                %210 = vst [vmem:[%s182 + $0x68] sm:$0xff] %v209
                %v211 = vld [vmem:[%s181 + $0x230] sm:$0xff]
                %212 = vst [vmem:[%s182 + $0x70] sm:$0xff] %v211
                %v213 = vld [vmem:[%s181 + $0x258] sm:$0xff]
                %214 = vst [vmem:[%s182 + $0x78] sm:$0xff] %v213
                %v215 = vld [vmem:[%s181 + $0x280] sm:$0xff]
                %216 = vst [vmem:[%s182 + $0x80] sm:$0xff] %v215
                %v217 = vld [vmem:[%s181 + $0x2a8] sm:$0xff]
                %218 = vst [vmem:[%s182 + $0x88] sm:$0xff] %v217
                %v219 = vld [vmem:[%s181 + $0x2d0] sm:$0xff]
                %220 = vst [vmem:[%s182 + $0x90] sm:$0xff] %v219
                %v221 = vld [vmem:[%s181 + $0x2f8] sm:$0xff]
                %222 = vst [vmem:[%s182 + $0x98] sm:$0xff] %v221
                %v223 = vld [vmem:[%s181 + $0x320] sm:$0xff]
                %224 = vst [vmem:[%s182 + $0xa0] sm:$0xff] %v223
                %v225 = vld [vmem:[%s181 + $0x348] sm:$0xff]
                %226 = vst [vmem:[%s182 + $0xa8] sm:$0xff] %v225
                %v227 = vld [vmem:[%s181 + $0x370] sm:$0xff]
                %228 = vst [vmem:[%s182 + $0xb0] sm:$0xff] %v227
                %v229 = vld [vmem:[%s181 + $0x398] sm:$0xff]
                %230 = vst [vmem:[%s182 + $0xb8] sm:$0xff] %v229
                %v231 = vld [vmem:[%s181 + $0x3c0] sm:$0xff]
                %232 = vst [vmem:[%s182 + $0xc0] sm:$0xff] %v231
                %v233 = vld [vmem:[%s181 + $0x3e8] sm:$0xff]
                %234 = vst [vmem:[%s182 + $0xc8] sm:$0xff] %v233
                %v235 = vld [vmem:[%s181 + $0x410] sm:$0xff]
                %236 = vst [vmem:[%s182 + $0xd0] sm:$0xff] %v235
                %v237 = vld [vmem:[%s181 + $0x438] sm:$0xff]
                %238 = vst [vmem:[%s182 + $0xd8] sm:$0xff] %v237
                %v239 = vld [vmem:[%s181 + $0x460] sm:$0xff]
                %240 = vst [vmem:[%s182 + $0xe0] sm:$0xff] %v239
                %v241 = vld [vmem:[%s181 + $0x488] sm:$0xff]
                %242 = vst [vmem:[%s182 + $0xe8] sm:$0xff] %v241
                %v243 = vld [vmem:[%s181 + $0x4b0] sm:$0xff]
                %244 = vst [vmem:[%s182 + $0xf0] sm:$0xff] %v243
                %v245 = vld [vmem:[%s181 + $0x4d8] sm:$0xff]
                %246 = vst [vmem:[%s182 + $0xf8] sm:$0xff] %v245
                %v247 = vld [vmem:[%s181 + $0x500] sm:$0xff]
                %248 = vst [vmem:[%s182 + $0x100] sm:$0xff] %v247
                %v249 = vld [vmem:[%s181 + $0x528] sm:$0xff]
                %250 = vst [vmem:[%s182 + $0x108] sm:$0xff] %v249
                %v251 = vld [vmem:[%s181 + $0x550] sm:$0xff]
                %252 = vst [vmem:[%s182 + $0x110] sm:$0xff] %v251
                %v253 = vld [vmem:[%s181 + $0x578] sm:$0xff]
                %254 = vst [vmem:[%s182 + $0x118] sm:$0xff] %v253
                %v255 = vld [vmem:[%s181 + $0x5a0] sm:$0xff]
                %256 = vst [vmem:[%s182 + $0x120] sm:$0xff] %v255
                %v257 = vld [vmem:[%s181 + $0x5c8] sm:$0xff]
                %258 = vst [vmem:[%s182 + $0x128] sm:$0xff] %v257
                %v259 = vld [vmem:[%s181 + $0x5f0] sm:$0xff]
                %260 = vst [vmem:[%s182 + $0x130] sm:$0xff] %v259
                %v261 = vld [vmem:[%s181 + $0x618] sm:$0xff]
                %262 = vst [vmem:[%s182 + $0x138] sm:$0xff] %v261
                %v263 = vld [vmem:[%s181 + $0x640] sm:$0xff]
                %264 = vst [vmem:[%s182 + $0x140] sm:$0xff] %v263
                %v265 = vld [vmem:[%s181 + $0x668] sm:$0xff]
                %266 = vst [vmem:[%s182 + $0x148] sm:$0xff] %v265
                %v267 = vld [vmem:[%s181 + $0x690] sm:$0xff]
                %268 = vst [vmem:[%s182 + $0x150] sm:$0xff] %v267
                %v269 = vld [vmem:[%s181 + $0x6b8] sm:$0xff]
                %270 = vst [vmem:[%s182 + $0x158] sm:$0xff] %v269
                %v271 = vld [vmem:[%s181 + $0x6e0] sm:$0xff]
                %272 = vst [vmem:[%s182 + $0x160] sm:$0xff] %v271
                %v273 = vld [vmem:[%s181 + $0x708] sm:$0xff]
                %274 = vst [vmem:[%s182 + $0x168] sm:$0xff] %v273
                %v275 = vld [vmem:[%s181 + $0x730] sm:$0xff]
                %276 = vst [vmem:[%s182 + $0x170] sm:$0xff] %v275
                %v277 = vld [vmem:[%s181 + $0x758] sm:$0xff]
                %278 = vst [vmem:[%s182 + $0x178] sm:$0xff] %v277
                %v279 = vld [vmem:[%s181 + $0x780] sm:$0xff]
                %280 = vst [vmem:[%s182 + $0x180] sm:$0xff] %v279
                %v281 = vld [vmem:[%s181 + $0x7a8] sm:$0xff]
                %282 = vst [vmem:[%s182 + $0x188] sm:$0xff] %v281
                %v283 = vld [vmem:[%s181 + $0x7d0] sm:$0xff]
                %284 = vst [vmem:[%s182 + $0x190] sm:$0xff] %v283
                %v285 = vld [vmem:[%s181 + $0x7f8] sm:$0xff]
                %286 = vst [vmem:[%s182 + $0x198] sm:$0xff] %v285
                %v287 = vld [vmem:[%s181 + $0x820] sm:$0xff]
                %288 = vst [vmem:[%s182 + $0x1a0] sm:$0xff] %v287
                %v289 = vld [vmem:[%s181 + $0x848] sm:$0xff]
                %290 = vst [vmem:[%s182 + $0x1a8] sm:$0xff] %v289
              $region37: #{m_forward.1} parent=31 // loop_footer
                %s180 = sadd.s32 1, %s176
              $region38: #{m_forward.1} parent=31 // loop_footer_branch
                %175 = sbr.rel target = $region34
              $region39: #{m_forward.1} parent=31 // loop_exit
                _
            $region32: #{m_forward.1} parent=23 // pred_fallthru
              _
          $region24: #{m_forward.1} parent=19 // pred_fallthru
            _
          %411 = vnop
        $region20: #{m_forward.1} parent=15 // pred_fallthru
          _
        // Predicated region
        $region55: #{m_forward.1} parent=15 // pred_check
          %p412 = pneg %p56
        $region56: #{m_forward.1} parent=15 // pred_check_branch
          %414 = sbr.rel (%p412) target = $region58
        $region57: #{m_forward.1} parent=15 // pred_region
          %s415 = sand.u32 %s46, 1
          %s416 = sand.u32 %s46, 1
          %s417 = smul.addr %s416, 40
          %s418 = scalar_lea.vmem [#allocation4], %s417
          %s419 = smul.addr %s10, 8
          %s420 = scalar_lea.vmem %s1, %s419
          // Predicated region
          $region59: #{m_forward.1} parent=57 // pred_check
            _
          $region60: #{m_forward.1} parent=57 // pred_check_branch
            %422 = sbr.rel (0) target = $region62
          $region61: #{m_forward.1} parent=57 // pred_region
            // Predicated region
            $region63: #{m_forward.1} parent=61 // pred_check
              _
            $region64: #{m_forward.1} parent=61 // pred_check_branch
              %424 = sbr.rel (0) target = $region66
            $region65: #{m_forward.1} parent=61 // pred_region
              // Predicated region
              $region78: #{m_forward.1} parent=65 // pred_check
                _
              $region79: #{m_forward.1} parent=65 // pred_check_branch
                %447 = sbr.rel (0) target = $region81
              $region80: #{m_forward.1} parent=65 // pred_region
                loop: start=0, step=1, limit=1
                $region82: #{m_forward.1} parent=80 // loop_pre_header
                  _
                $region83: #{m_forward.1} parent=80 // loop_header
                  %s449 = sphi 0, %s453
                  %p450 = scmp.ge.s32.totalorder %s449, 1
                  %s454 = sphi %s420, %s420
                  %s455 = sphi %s418, %s418
                $region84: #{m_forward.1} parent=80 // loop_header_branch
                  %452 = sbr.rel (%p450) target = $region88
                $region85: #{m_forward.1} parent=80 // loop_body
                  %v456 = vld [vmem:[%s454] sm:$0xff]
                  %457 = vst [vmem:[%s455] sm:$0xff] %v456
                  %v458 = vld [vmem:[%s454 + $0x28] sm:$0xff]
                  %459 = vst [vmem:[%s455 + $0x8] sm:$0xff] %v458
                  %v460 = vld [vmem:[%s454 + $0x50] sm:$0xff]
                  %461 = vst [vmem:[%s455 + $0x10] sm:$0xff] %v460
                  %v462 = vld [vmem:[%s454 + $0x78] sm:$0xff]
                  %463 = vst [vmem:[%s455 + $0x18] sm:$0xff] %v462
                  %v464 = vld [vmem:[%s454 + $0xa0] sm:$0xff]
                  %465 = vst [vmem:[%s455 + $0x20] sm:$0xff] %v464
                $region86: #{m_forward.1} parent=80 // loop_footer
                  %s453 = sadd.s32 1, %s449
                $region87: #{m_forward.1} parent=80 // loop_footer_branch
                  %448 = sbr.rel target = $region83
                $region88: #{m_forward.1} parent=80 // loop_exit
                  _
              $region81: #{m_forward.1} parent=65 // pred_fallthru
                _
              // Predicated region
              $region89: #{m_forward.1} parent=65 // pred_check
                _
              $region90: #{m_forward.1} parent=65 // pred_check_branch
                %467 = sbr.rel target = $region92
              $region91: #{m_forward.1} parent=65 // pred_region
                _
              $region92: #{m_forward.1} parent=65 // pred_fallthru
                _
            $region66: #{m_forward.1} parent=61 // pred_fallthru
              _
            // Predicated region
            $region67: #{m_forward.1} parent=61 // pred_check
              _
            $region68: #{m_forward.1} parent=61 // pred_check_branch
              %426 = sbr.rel target = $region70
            $region69: #{m_forward.1} parent=61 // pred_region
              loop: start=0, step=1, limit=1
              $region71: #{m_forward.1} parent=69 // loop_pre_header
                _
              $region72: #{m_forward.1} parent=69 // loop_header
                %s429 = sphi 0, %s433
                %p430 = scmp.ge.s32.totalorder %s429, 1
                %s434 = sphi %s420, %s420
                %s435 = sphi %s418, %s418
              $region73: #{m_forward.1} parent=69 // loop_header_branch
                %432 = sbr.rel (%p430) target = $region77
              $region74: #{m_forward.1} parent=69 // loop_body
                %v436 = vld [vmem:[%s434] sm:$0xff]
                %437 = vst [vmem:[%s435] sm:$0xff] %v436
                %v438 = vld [vmem:[%s434 + $0x28] sm:$0xff]
                %439 = vst [vmem:[%s435 + $0x8] sm:$0xff] %v438
                %v440 = vld [vmem:[%s434 + $0x50] sm:$0xff]
                %441 = vst [vmem:[%s435 + $0x10] sm:$0xff] %v440
                %v442 = vld [vmem:[%s434 + $0x78] sm:$0xff]
                %443 = vst [vmem:[%s435 + $0x18] sm:$0xff] %v442
                %v444 = vld [vmem:[%s434 + $0xa0] sm:$0xff]
                %445 = vst [vmem:[%s435 + $0x20] sm:$0xff] %v444
              $region75: #{m_forward.1} parent=69 // loop_footer
                %s433 = sadd.s32 1, %s429
              $region76: #{m_forward.1} parent=69 // loop_footer_branch
                %428 = sbr.rel target = $region72
              $region77: #{m_forward.1} parent=69 // loop_exit
                _
            $region70: #{m_forward.1} parent=61 // pred_fallthru
              _
          $region62: #{m_forward.1} parent=57 // pred_fallthru
            _
          %468 = vnop
        $region58: #{m_forward.1} parent=15 // pred_fallthru
          _
        // Predicated region
        $region93: #{m_forward.1} parent=15 // pred_check
          %p469 = pneg %p82
        $region94: #{m_forward.1} parent=15 // pred_check_branch
          %471 = sbr.rel (%p469) target = $region96
        $region95: #{m_forward.1} parent=15 // pred_region
          %p472 = scmp.lt.s32.totalorder %s10, 4
          %s473 = scalar_select %p472, %s10, 4
          %s474 = scalar_lea.vmem %s2, %s473
        $region96: #{m_forward.1} parent=15 // pred_fallthru
          _
        // Predicated region
        $region97: #{m_forward.1} parent=15 // pred_check
          %p475 = pneg %p108
        $region98: #{m_forward.1} parent=15 // pred_check_branch
          %477 = sbr.rel (%p475) target = $region100
        $region99: #{m_forward.1} parent=15 // pred_region
          %p478 = scmp.lt.s32.totalorder %s10, 4
          %s479 = scalar_select %p478, %s10, 4
          %s480 = scalar_lea.vmem %s3, %s479
        $region100: #{m_forward.1} parent=15 // pred_fallthru
          _
      $region16: #{m_forward.1} parent=5 // pred_fallthru
        _
      %p481 = scmp.le.s32.totalorder 1, %s10
      %p482 = scmp.lt.s32.totalorder %s10, 6
      %p483 = pnand %p481, %p482
      %p484 = pneg %p483
      // Predicated region
      $region101: #{m_forward.1} parent=5 // pred_check
        _
      $region102: #{m_forward.1} parent=5 // pred_check_branch
        %486 = sbr.rel (%p483) target = $region104
      $region103: #{m_forward.1} parent=5 // pred_region
        %s487 = ssub.s32 %s10, 1
        %s488 = sand.u32 %s23, 1
        %s489 = sand.u32 %s23, 1
        %s490 = smul.addr %s489, 432
        %s491 = scalar_lea.vmem [#allocation3], %s490
        // Predicated region
        $region105: #{m_forward.1} parent=103 // pred_check
          %p492 = pneg %p36
        $region106: #{m_forward.1} parent=103 // pred_check_branch
          %494 = sbr.rel (%p492) target = $region108
        $region107: #{m_forward.1} parent=103 // pred_region
          _
        $region108: #{m_forward.1} parent=103 // pred_fallthru
          _
        %s495 = sand.u32 %s49, 1
        %s496 = sand.u32 %s49, 1
        %s497 = smul.addr %s496, 40
        %s498 = scalar_lea.vmem [#allocation4], %s497
        // Predicated region
        $region109: #{m_forward.1} parent=103 // pred_check
          %p499 = pneg %p62
        $region110: #{m_forward.1} parent=103 // pred_check_branch
          %501 = sbr.rel (%p499) target = $region112
        $region111: #{m_forward.1} parent=103 // pred_region
          _
        $region112: #{m_forward.1} parent=103 // pred_fallthru
          _
        %s502 = sand.u32 %s23, 1
        %s503 = sand.u32 %s23, 1
        %s504 = smul.addr %s503, 432
        %s505 = scalar_lea.vmem [#allocation3], %s504
        %p506 = pneg %p36
        %p507 = pneg %p33
        %s508 = sand.u32 %s49, 1
        %s509 = sand.u32 %s49, 1
        %s510 = smul.addr %s509, 40
        %s511 = scalar_lea.vmem [#allocation4], %s510
        %p512 = pneg %p62
        %p513 = pneg %p59
        %p514 = scmp.lt.s32.totalorder %s15, 4
        %s515 = scalar_select %p514, %s15, 4
        %s516 = scalar_lea.vmem %s2, %s515
        %p517 = pneg %p88
        %p518 = pneg %p85
        %p519 = scmp.lt.s32.totalorder %s15, 4
        %s520 = scalar_select %p519, %s15, 4
        %s521 = scalar_lea.vmem %s3, %s520
        %p522 = pneg %p114
        %p523 = pneg %p111
        %p524 = pneg %p140
        %p525 = pneg %p137
        %s526 = sand.u32 %s127, 1
        %s527 = sand.u32 %s127, 1
        %s528 = smul.addr %s527, 56
        %s529 = scalar_lea.vmem [#allocation5], %s528
        %p530 = scmp.lt.s32.totalorder %s15, 4
        %s531 = scalar_select %p530, %s15, 4
        %s532 = scalar_lea.vmem %s2, %s531
        %p533 = scmp.lt.s32.totalorder %s15, 4
        %s534 = scalar_select %p533, %s15, 4
        %s535 = scalar_lea.vmem %s3, %s534
        %v536 = vld [vmem:[%s491] ss:$2 sm:$0xff]
        %s537 = scalar_lea.vmem %s491, 16 [#allocation3]
        %v538 = vld [vmem:[%s537] ss:$2 sm:$0x1]
        %s539 = scalar_lea.vmem %s491, 48 [#allocation3]
        %v540 = vld [vmem:[%s539] ss:$2 sm:$0xff]
        %s541 = scalar_lea.vmem %s491, 64 [#allocation3]
        %v542 = vld [vmem:[%s541] ss:$2 sm:$0x1]
        %s543 = scalar_lea.vmem %s491, 96 [#allocation3]
        %v544 = vld [vmem:[%s543] ss:$2 sm:$0xff]
        %s545 = scalar_lea.vmem %s491, 112 [#allocation3]
        %v546 = vld [vmem:[%s545] ss:$2 sm:$0x1]
        %s547 = scalar_lea.vmem %s491, 144 [#allocation3]
        %v548 = vld [vmem:[%s547] ss:$2 sm:$0xff]
        %s549 = scalar_lea.vmem %s491, 160 [#allocation3]
        %v550 = vld [vmem:[%s549] ss:$2 sm:$0x1]
        %s551 = scalar_lea.vmem %s491, 192 [#allocation3]
        %v552 = vld [vmem:[%s551] ss:$2 sm:$0xff]
        %s553 = scalar_lea.vmem %s491, 208 [#allocation3]
        %v554 = vld [vmem:[%s553] ss:$2 sm:$0x1]
        %s555 = scalar_lea.vmem %s491, 240 [#allocation3]
        %v556 = vld [vmem:[%s555] ss:$2 sm:$0xff]
        %s557 = scalar_lea.vmem %s491, 256 [#allocation3]
        %v558 = vld [vmem:[%s557] ss:$2 sm:$0x1]
        %s559 = scalar_lea.vmem %s491, 288 [#allocation3]
        %v560 = vld [vmem:[%s559] ss:$2 sm:$0xff]
        %s561 = scalar_lea.vmem %s491, 304 [#allocation3]
        %v562 = vld [vmem:[%s561] ss:$2 sm:$0x1]
        %s563 = scalar_lea.vmem %s491, 336 [#allocation3]
        %v564 = vld [vmem:[%s563] ss:$2 sm:$0xff]
        %s565 = scalar_lea.vmem %s491, 352 [#allocation3]
        %v566 = vld [vmem:[%s565] ss:$2 sm:$0x1]
        %s567 = scalar_lea.vmem %s491, 384 [#allocation3]
        %v568 = vld [vmem:[%s567] ss:$2 sm:$0xff]
        %s569 = scalar_lea.vmem %s491, 400 [#allocation3]
        %v570 = vld [vmem:[%s569] ss:$2 sm:$0x1]
        %v571 = vmax.f32 %v536, 0.0
        %v572 = vmax.f32 %v538, 0.0
        %v573 = vmax.f32 %v540, 0.0
        %v574 = vmax.f32 %v542, 0.0
        %v575 = vmax.f32 %v544, 0.0
        %v576 = vmax.f32 %v546, 0.0
        %v577 = vmax.f32 %v548, 0.0
        %v578 = vmax.f32 %v550, 0.0
        %v579 = vmax.f32 %v552, 0.0
        %v580 = vmax.f32 %v554, 0.0
        %v581 = vmax.f32 %v556, 0.0
        %v582 = vmax.f32 %v558, 0.0
        %v583 = vmax.f32 %v560, 0.0
        %v584 = vmax.f32 %v562, 0.0
        %v585 = vmax.f32 %v564, 0.0
        %v586 = vmax.f32 %v566, 0.0
        %v587 = vmax.f32 %v568, 0.0
        %v588 = vmax.f32 %v570, 0.0
        %589 = vst [vmem:[#allocation2] sm:$0xff] %v571
        %590 = vst [vmem:[#allocation2 + $0x8] sm:$0x1] %v572
        %591 = vst [vmem:[#allocation2 + $0x10] sm:$0xff] %v573
        %592 = vst [vmem:[#allocation2 + $0x18] sm:$0x1] %v574
        %593 = vst [vmem:[#allocation2 + $0x20] sm:$0xff] %v575
        %594 = vst [vmem:[#allocation2 + $0x28] sm:$0x1] %v576
        %595 = vst [vmem:[#allocation2 + $0x30] sm:$0xff] %v577
        %596 = vst [vmem:[#allocation2 + $0x38] sm:$0x1] %v578
        %597 = vst [vmem:[#allocation2 + $0x40] sm:$0xff] %v579
        %598 = vst [vmem:[#allocation2 + $0x48] sm:$0x1] %v580
        %599 = vst [vmem:[#allocation2 + $0x50] sm:$0xff] %v581
        %600 = vst [vmem:[#allocation2 + $0x58] sm:$0x1] %v582
        %601 = vst [vmem:[#allocation2 + $0x60] sm:$0xff] %v583
        %602 = vst [vmem:[#allocation2 + $0x68] sm:$0x1] %v584
        %603 = vst [vmem:[#allocation2 + $0x70] sm:$0xff] %v585
        %604 = vst [vmem:[#allocation2 + $0x78] sm:$0x1] %v586
        %605 = vst [vmem:[#allocation2 + $0x80] sm:$0xff] %v587
        %606 = vst [vmem:[#allocation2 + $0x88] sm:$0x1] %v588
        %s607 = scalar_lea.vmem %s491, 1 [#allocation3]
        %v608 = vld [vmem:[%s607] ss:$2 sm:$0xff]
        %s609 = scalar_lea.vmem %s491, 17 [#allocation3]
        %v610 = vld [vmem:[%s609] ss:$2 sm:$0x1]
        %s611 = scalar_lea.vmem %s491, 49 [#allocation3]
        %v612 = vld [vmem:[%s611] ss:$2 sm:$0xff]
        %s613 = scalar_lea.vmem %s491, 65 [#allocation3]
        %v614 = vld [vmem:[%s613] ss:$2 sm:$0x1]
        %s615 = scalar_lea.vmem %s491, 97 [#allocation3]
        %v616 = vld [vmem:[%s615] ss:$2 sm:$0xff]
        %s617 = scalar_lea.vmem %s491, 113 [#allocation3]
        %v618 = vld [vmem:[%s617] ss:$2 sm:$0x1]
        %s619 = scalar_lea.vmem %s491, 145 [#allocation3]
        %v620 = vld [vmem:[%s619] ss:$2 sm:$0xff]
        %s621 = scalar_lea.vmem %s491, 161 [#allocation3]
        %v622 = vld [vmem:[%s621] ss:$2 sm:$0x1]
        %s623 = scalar_lea.vmem %s491, 193 [#allocation3]
        %v624 = vld [vmem:[%s623] ss:$2 sm:$0xff]
        %s625 = scalar_lea.vmem %s491, 209 [#allocation3]
        %v626 = vld [vmem:[%s625] ss:$2 sm:$0x1]
        %s627 = scalar_lea.vmem %s491, 241 [#allocation3]
        %v628 = vld [vmem:[%s627] ss:$2 sm:$0xff]
        %s629 = scalar_lea.vmem %s491, 257 [#allocation3]
        %v630 = vld [vmem:[%s629] ss:$2 sm:$0x1]
        %s631 = scalar_lea.vmem %s491, 289 [#allocation3]
        %v632 = vld [vmem:[%s631] ss:$2 sm:$0xff]
        %s633 = scalar_lea.vmem %s491, 305 [#allocation3]
        %v634 = vld [vmem:[%s633] ss:$2 sm:$0x1]
        %s635 = scalar_lea.vmem %s491, 337 [#allocation3]
        %v636 = vld [vmem:[%s635] ss:$2 sm:$0xff]
        %s637 = scalar_lea.vmem %s491, 353 [#allocation3]
        %v638 = vld [vmem:[%s637] ss:$2 sm:$0x1]
        %s639 = scalar_lea.vmem %s491, 385 [#allocation3]
        %v640 = vld [vmem:[%s639] ss:$2 sm:$0xff]
        %s641 = scalar_lea.vmem %s491, 401 [#allocation3]
        %v642 = vld [vmem:[%s641] ss:$2 sm:$0x1]
        %v643 = vmax.f32 %v608, 0.0
        %v644 = vmax.f32 %v610, 0.0
        %v645 = vmax.f32 %v612, 0.0
        %v646 = vmax.f32 %v614, 0.0
        %v647 = vmax.f32 %v616, 0.0
        %v648 = vmax.f32 %v618, 0.0
        %v649 = vmax.f32 %v620, 0.0
        %v650 = vmax.f32 %v622, 0.0
        %v651 = vmax.f32 %v624, 0.0
        %v652 = vmax.f32 %v626, 0.0
        %v653 = vmax.f32 %v628, 0.0
        %v654 = vmax.f32 %v630, 0.0
        %v655 = vmax.f32 %v632, 0.0
        %v656 = vmax.f32 %v634, 0.0
        %v657 = vmax.f32 %v636, 0.0
        %v658 = vmax.f32 %v638, 0.0
        %v659 = vmax.f32 %v640, 0.0
        %v660 = vmax.f32 %v642, 0.0
        %s661 = scalar_lea.vmem [#allocation2], 144
        %662 = vst [vmem:[%s661] sm:$0xff] %v643
        %663 = vst [vmem:[%s661 + $0x8] sm:$0x1] %v644
        %664 = vst [vmem:[%s661 + $0x10] sm:$0xff] %v645
        %665 = vst [vmem:[%s661 + $0x18] sm:$0x1] %v646
        %666 = vst [vmem:[%s661 + $0x20] sm:$0xff] %v647
        %667 = vst [vmem:[%s661 + $0x28] sm:$0x1] %v648
        %668 = vst [vmem:[%s661 + $0x30] sm:$0xff] %v649
        %669 = vst [vmem:[%s661 + $0x38] sm:$0x1] %v650
        %670 = vst [vmem:[%s661 + $0x40] sm:$0xff] %v651
        %671 = vst [vmem:[%s661 + $0x48] sm:$0x1] %v652
        %672 = vst [vmem:[%s661 + $0x50] sm:$0xff] %v653
        %673 = vst [vmem:[%s661 + $0x58] sm:$0x1] %v654
        %674 = vst [vmem:[%s661 + $0x60] sm:$0xff] %v655
        %675 = vst [vmem:[%s661 + $0x68] sm:$0x1] %v656
        %676 = vst [vmem:[%s661 + $0x70] sm:$0xff] %v657
        %677 = vst [vmem:[%s661 + $0x78] sm:$0x1] %v658
        %678 = vst [vmem:[%s661 + $0x80] sm:$0xff] %v659
        %679 = vst [vmem:[%s661 + $0x88] sm:$0x1] %v660
        %s680 = scalar_lea.vmem %s491, 24 [#allocation3]
        %v681 = vld [vmem:[%s680] ss:$2 sm:$0xff]
        %s682 = scalar_lea.vmem %s680, 16 [#allocation3]
        %v683 = vld [vmem:[%s682] ss:$2 sm:$0x1]
        %s684 = scalar_lea.vmem %s680, 48 [#allocation3]
        %v685 = vld [vmem:[%s684] ss:$2 sm:$0xff]
        %s686 = scalar_lea.vmem %s680, 64 [#allocation3]
        %v687 = vld [vmem:[%s686] ss:$2 sm:$0x1]
        %s688 = scalar_lea.vmem %s680, 96 [#allocation3]
        %v689 = vld [vmem:[%s688] ss:$2 sm:$0xff]
        %s690 = scalar_lea.vmem %s680, 112 [#allocation3]
        %v691 = vld [vmem:[%s690] ss:$2 sm:$0x1]
        %s692 = scalar_lea.vmem %s680, 144 [#allocation3]
        %v693 = vld [vmem:[%s692] ss:$2 sm:$0xff]
        %s694 = scalar_lea.vmem %s680, 160 [#allocation3]
        %v695 = vld [vmem:[%s694] ss:$2 sm:$0x1]
        %s696 = scalar_lea.vmem %s680, 192 [#allocation3]
        %v697 = vld [vmem:[%s696] ss:$2 sm:$0xff]
        %s698 = scalar_lea.vmem %s680, 208 [#allocation3]
        %v699 = vld [vmem:[%s698] ss:$2 sm:$0x1]
        %s700 = scalar_lea.vmem %s680, 240 [#allocation3]
        %v701 = vld [vmem:[%s700] ss:$2 sm:$0xff]
        %s702 = scalar_lea.vmem %s680, 256 [#allocation3]
        %v703 = vld [vmem:[%s702] ss:$2 sm:$0x1]
        %s704 = scalar_lea.vmem %s680, 288 [#allocation3]
        %v705 = vld [vmem:[%s704] ss:$2 sm:$0xff]
        %s706 = scalar_lea.vmem %s680, 304 [#allocation3]
        %v707 = vld [vmem:[%s706] ss:$2 sm:$0x1]
        %s708 = scalar_lea.vmem %s680, 336 [#allocation3]
        %v709 = vld [vmem:[%s708] ss:$2 sm:$0xff]
        %s710 = scalar_lea.vmem %s680, 352 [#allocation3]
        %v711 = vld [vmem:[%s710] ss:$2 sm:$0x1]
        %s712 = scalar_lea.vmem %s680, 384 [#allocation3]
        %v713 = vld [vmem:[%s712] ss:$2 sm:$0xff]
        %s714 = scalar_lea.vmem %s680, 400 [#allocation3]
        %v715 = vld [vmem:[%s714] ss:$2 sm:$0x1]
        %v716 = vmax.f32 %v681, 0.0
        %v717 = vmax.f32 %v683, 0.0
        %v718 = vmax.f32 %v685, 0.0
        %v719 = vmax.f32 %v687, 0.0
        %v720 = vmax.f32 %v689, 0.0
        %v721 = vmax.f32 %v691, 0.0
        %v722 = vmax.f32 %v693, 0.0
        %v723 = vmax.f32 %v695, 0.0
        %v724 = vmax.f32 %v697, 0.0
        %v725 = vmax.f32 %v699, 0.0
        %v726 = vmax.f32 %v701, 0.0
        %v727 = vmax.f32 %v703, 0.0
        %v728 = vmax.f32 %v705, 0.0
        %v729 = vmax.f32 %v707, 0.0
        %v730 = vmax.f32 %v709, 0.0
        %v731 = vmax.f32 %v711, 0.0
        %v732 = vmax.f32 %v713, 0.0
        %v733 = vmax.f32 %v715, 0.0
        %s734 = scalar_lea.vmem [#allocation2], 288
        %735 = vst [vmem:[%s734] sm:$0xff] %v716
        %736 = vst [vmem:[%s734 + $0x8] sm:$0x1] %v717
        %737 = vst [vmem:[%s734 + $0x10] sm:$0xff] %v718
        %738 = vst [vmem:[%s734 + $0x18] sm:$0x1] %v719
        %739 = vst [vmem:[%s734 + $0x20] sm:$0xff] %v720
        %740 = vst [vmem:[%s734 + $0x28] sm:$0x1] %v721
        %741 = vst [vmem:[%s734 + $0x30] sm:$0xff] %v722
        %742 = vst [vmem:[%s734 + $0x38] sm:$0x1] %v723
        %743 = vst [vmem:[%s734 + $0x40] sm:$0xff] %v724
        %744 = vst [vmem:[%s734 + $0x48] sm:$0x1] %v725
        %745 = vst [vmem:[%s734 + $0x50] sm:$0xff] %v726
        %746 = vst [vmem:[%s734 + $0x58] sm:$0x1] %v727
        %747 = vst [vmem:[%s734 + $0x60] sm:$0xff] %v728
        %748 = vst [vmem:[%s734 + $0x68] sm:$0x1] %v729
        %749 = vst [vmem:[%s734 + $0x70] sm:$0xff] %v730
        %750 = vst [vmem:[%s734 + $0x78] sm:$0x1] %v731
        %751 = vst [vmem:[%s734 + $0x80] sm:$0xff] %v732
        %752 = vst [vmem:[%s734 + $0x88] sm:$0x1] %v733
        %s753 = scalar_lea.vmem %s680, 1 [#allocation3]
        %v754 = vld [vmem:[%s753] ss:$2 sm:$0xff]
        %s755 = scalar_lea.vmem %s680, 17 [#allocation3]
        %v756 = vld [vmem:[%s755] ss:$2 sm:$0x1]
        %s757 = scalar_lea.vmem %s680, 49 [#allocation3]
        %v758 = vld [vmem:[%s757] ss:$2 sm:$0xff]
        %s759 = scalar_lea.vmem %s680, 65 [#allocation3]
        %v760 = vld [vmem:[%s759] ss:$2 sm:$0x1]
        %s761 = scalar_lea.vmem %s680, 97 [#allocation3]
        %v762 = vld [vmem:[%s761] ss:$2 sm:$0xff]
        %s763 = scalar_lea.vmem %s680, 113 [#allocation3]
        %v764 = vld [vmem:[%s763] ss:$2 sm:$0x1]
        %s765 = scalar_lea.vmem %s680, 145 [#allocation3]
        %v766 = vld [vmem:[%s765] ss:$2 sm:$0xff]
        %s767 = scalar_lea.vmem %s680, 161 [#allocation3]
        %v768 = vld [vmem:[%s767] ss:$2 sm:$0x1]
        %s769 = scalar_lea.vmem %s680, 193 [#allocation3]
        %v770 = vld [vmem:[%s769] ss:$2 sm:$0xff]
        %s771 = scalar_lea.vmem %s680, 209 [#allocation3]
        %v772 = vld [vmem:[%s771] ss:$2 sm:$0x1]
        %s773 = scalar_lea.vmem %s680, 241 [#allocation3]
        %v774 = vld [vmem:[%s773] ss:$2 sm:$0xff]
        %s775 = scalar_lea.vmem %s680, 257 [#allocation3]
        %v776 = vld [vmem:[%s775] ss:$2 sm:$0x1]
        %s777 = scalar_lea.vmem %s680, 289 [#allocation3]
        %v778 = vld [vmem:[%s777] ss:$2 sm:$0xff]
        %s779 = scalar_lea.vmem %s680, 305 [#allocation3]
        %v780 = vld [vmem:[%s779] ss:$2 sm:$0x1]
        %s781 = scalar_lea.vmem %s680, 337 [#allocation3]
        %v782 = vld [vmem:[%s781] ss:$2 sm:$0xff]
        %s783 = scalar_lea.vmem %s680, 353 [#allocation3]
        %v784 = vld [vmem:[%s783] ss:$2 sm:$0x1]
        %s785 = scalar_lea.vmem %s680, 385 [#allocation3]
        %v786 = vld [vmem:[%s785] ss:$2 sm:$0xff]
        %s787 = scalar_lea.vmem %s680, 401 [#allocation3]
        %v788 = vld [vmem:[%s787] ss:$2 sm:$0x1]
        %v789 = vmax.f32 %v754, 0.0
        %v790 = vmax.f32 %v756, 0.0
        %v791 = vmax.f32 %v758, 0.0
        %v792 = vmax.f32 %v760, 0.0
        %v793 = vmax.f32 %v762, 0.0
        %v794 = vmax.f32 %v764, 0.0
        %v795 = vmax.f32 %v766, 0.0
        %v796 = vmax.f32 %v768, 0.0
        %v797 = vmax.f32 %v770, 0.0
        %v798 = vmax.f32 %v772, 0.0
        %v799 = vmax.f32 %v774, 0.0
        %v800 = vmax.f32 %v776, 0.0
        %v801 = vmax.f32 %v778, 0.0
        %v802 = vmax.f32 %v780, 0.0
        %v803 = vmax.f32 %v782, 0.0
        %v804 = vmax.f32 %v784, 0.0
        %v805 = vmax.f32 %v786, 0.0
        %v806 = vmax.f32 %v788, 0.0
        %s807 = scalar_lea.vmem [#allocation2], 432
        %808 = vst [vmem:[%s807] sm:$0xff] %v789
        %809 = vst [vmem:[%s807 + $0x8] sm:$0x1] %v790
        %810 = vst [vmem:[%s807 + $0x10] sm:$0xff] %v791
        %811 = vst [vmem:[%s807 + $0x18] sm:$0x1] %v792
        %812 = vst [vmem:[%s807 + $0x20] sm:$0xff] %v793
        %813 = vst [vmem:[%s807 + $0x28] sm:$0x1] %v794
        %814 = vst [vmem:[%s807 + $0x30] sm:$0xff] %v795
        %815 = vst [vmem:[%s807 + $0x38] sm:$0x1] %v796
        %816 = vst [vmem:[%s807 + $0x40] sm:$0xff] %v797
        %817 = vst [vmem:[%s807 + $0x48] sm:$0x1] %v798
        %818 = vst [vmem:[%s807 + $0x50] sm:$0xff] %v799
        %819 = vst [vmem:[%s807 + $0x58] sm:$0x1] %v800
        %820 = vst [vmem:[%s807 + $0x60] sm:$0xff] %v801
        %821 = vst [vmem:[%s807 + $0x68] sm:$0x1] %v802
        %822 = vst [vmem:[%s807 + $0x70] sm:$0xff] %v803
        %823 = vst [vmem:[%s807 + $0x78] sm:$0x1] %v804
        %824 = vst [vmem:[%s807 + $0x80] sm:$0xff] %v805
        %825 = vst [vmem:[%s807 + $0x88] sm:$0x1] %v806
        %v826 = vld [vmem:[%s498] sm:$0x1]
        %v827 = vld [vmem:[#allocation2] sm:$0xff]
        %v828 = vld [vmem:[#allocation2 + $0x8] sm:$0x1]
        %v829 = vld [vmem:[#allocation2 + $0x10] sm:$0xff]
        %v830 = vld [vmem:[#allocation2 + $0x18] sm:$0x1]
        %v831 = vld [vmem:[#allocation2 + $0x20] sm:$0xff]
        %v832 = vld [vmem:[#allocation2 + $0x28] sm:$0x1]
        %v833 = vld [vmem:[#allocation2 + $0x30] sm:$0xff]
        %v834 = vld [vmem:[#allocation2 + $0x38] sm:$0x1]
        %v835 = vld [vmem:[#allocation2 + $0x40] sm:$0xff]
        %v836 = vld [vmem:[#allocation2 + $0x48] sm:$0x1]
        %v837 = vld [vmem:[#allocation2 + $0x50] sm:$0xff]
        %v838 = vld [vmem:[#allocation2 + $0x58] sm:$0x1]
        %v839 = vld [vmem:[#allocation2 + $0x60] sm:$0xff]
        %v840 = vld [vmem:[#allocation2 + $0x68] sm:$0x1]
        %v841 = vlaneseq
        %v842 = vshrl.u32 %v841, 7
        %v843 = vsub.s32 0, %v842
        %v844 = vrot.slane %v826, %v843
        %v845 = vmul.f32 %v827, %v844
        %v846 = vmul.f32 %v829, %v844
        %v847 = vmul.f32 %v831, %v844
        %v848 = vmul.f32 %v833, %v844
        %v849 = vmul.f32 %v835, %v844
        %v850 = vmul.f32 %v837, %v844
        %v851 = vmul.f32 %v839, %v844
        %v852 = vadd.f32 %v845, 0.0
        %v853 = vadd.f32 %v846, 0.0
        %v854 = vadd.f32 %v847, 0.0
        %v855 = vadd.f32 %v848, 0.0
        %v856 = vadd.f32 %v849, 0.0
        %v857 = vadd.f32 %v850, 0.0
        %v858 = vadd.f32 %v851, 0.0
        %v859 = vld [vmem:[%s498 + $0x1] sm:$0x1]
        %v860 = vld [vmem:[%s661] sm:$0xff]
        %v861 = vld [vmem:[%s661 + $0x10] sm:$0xff]
        %v862 = vld [vmem:[%s661 + $0x20] sm:$0xff]
        %v863 = vld [vmem:[%s661 + $0x30] sm:$0xff]
        %v864 = vld [vmem:[%s661 + $0x40] sm:$0xff]
        %v865 = vld [vmem:[%s661 + $0x50] sm:$0xff]
        %v866 = vld [vmem:[%s661 + $0x60] sm:$0xff]
        %v867 = vlaneseq
        %v868 = vshrl.u32 %v867, 7
        %v869 = vsub.s32 0, %v868
        %v870 = vrot.slane %v859, %v869
        %v871 = vmul.f32 %v860, %v870
        %v872 = vmul.f32 %v861, %v870
        %v873 = vmul.f32 %v862, %v870
        %v874 = vmul.f32 %v863, %v870
        %v875 = vmul.f32 %v864, %v870
        %v876 = vmul.f32 %v865, %v870
        %v877 = vmul.f32 %v866, %v870
        %v878 = vadd.f32 %v852, %v871
        %v879 = vadd.f32 %v853, %v872
        %v880 = vadd.f32 %v854, %v873
        %v881 = vadd.f32 %v855, %v874
        %v882 = vadd.f32 %v856, %v875
        %v883 = vadd.f32 %v857, %v876
        %v884 = vadd.f32 %v858, %v877
        %s885 = scalar_lea.vmem %s498, 8 [#allocation4]
        %v886 = vld [vmem:[%s885] sm:$0x1]
        %v887 = vld [vmem:[%s734] sm:$0xff]
        %v888 = vld [vmem:[%s734 + $0x8] sm:$0x1]
        %v889 = vld [vmem:[%s734 + $0x10] sm:$0xff]
        %v890 = vld [vmem:[%s734 + $0x18] sm:$0x1]
        %v891 = vld [vmem:[%s734 + $0x20] sm:$0xff]
        %v892 = vld [vmem:[%s734 + $0x28] sm:$0x1]
        %v893 = vld [vmem:[%s734 + $0x30] sm:$0xff]
        %v894 = vld [vmem:[%s734 + $0x38] sm:$0x1]
        %v895 = vld [vmem:[%s734 + $0x40] sm:$0xff]
        %v896 = vld [vmem:[%s734 + $0x48] sm:$0x1]
        %v897 = vld [vmem:[%s734 + $0x50] sm:$0xff]
        %v898 = vld [vmem:[%s734 + $0x58] sm:$0x1]
        %v899 = vld [vmem:[%s734 + $0x60] sm:$0xff]
        %v900 = vld [vmem:[%s734 + $0x68] sm:$0x1]
        %v901 = vlaneseq
        %v902 = vshrl.u32 %v901, 7
        %v903 = vsub.s32 0, %v902
        %v904 = vrot.slane %v886, %v903
        %v905 = vmul.f32 %v887, %v904
        %v906 = vmul.f32 %v889, %v904
        %v907 = vmul.f32 %v891, %v904
        %v908 = vmul.f32 %v893, %v904
        %v909 = vmul.f32 %v895, %v904
        %v910 = vmul.f32 %v897, %v904
        %v911 = vmul.f32 %v899, %v904
        %v912 = vadd.f32 %v878, %v905
        %v913 = vadd.f32 %v879, %v906
        %v914 = vadd.f32 %v880, %v907
        %v915 = vadd.f32 %v881, %v908
        %v916 = vadd.f32 %v882, %v909
        %v917 = vadd.f32 %v883, %v910
        %v918 = vadd.f32 %v884, %v911
        %v919 = vld [vmem:[%s885 + $0x1] sm:$0x1]
        %v920 = vld [vmem:[%s807] sm:$0xff]
        %v921 = vld [vmem:[%s807 + $0x10] sm:$0xff]
        %v922 = vld [vmem:[%s807 + $0x20] sm:$0xff]
        %v923 = vld [vmem:[%s807 + $0x30] sm:$0xff]
        %v924 = vld [vmem:[%s807 + $0x40] sm:$0xff]
        %v925 = vld [vmem:[%s807 + $0x50] sm:$0xff]
        %v926 = vld [vmem:[%s807 + $0x60] sm:$0xff]
        %v927 = vlaneseq
        %v928 = vshrl.u32 %v927, 7
        %v929 = vsub.s32 0, %v928
        %v930 = vrot.slane %v919, %v929
        %v931 = vmul.f32 %v920, %v930
        %v932 = vmul.f32 %v921, %v930
        %v933 = vmul.f32 %v922, %v930
        %v934 = vmul.f32 %v923, %v930
        %v935 = vmul.f32 %v924, %v930
        %v936 = vmul.f32 %v925, %v930
        %v937 = vmul.f32 %v926, %v930
        %v938 = vadd.f32 %v912, %v931
        %v939 = vadd.f32 %v913, %v932
        %v940 = vadd.f32 %v914, %v933
        %v941 = vadd.f32 %v915, %v934
        %v942 = vadd.f32 %v916, %v935
        %v943 = vadd.f32 %v917, %v936
        %v944 = vadd.f32 %v918, %v937
        %s945 = scalar_lea.vmem %s498, 16 [#allocation4]
        %v946 = vld [vmem:[%s945] sm:$0x1]
        %s947 = scalar_lea.vmem [#allocation2], 16
        %v948 = vld [vmem:[%s947] sm:$0xff]
        %v949 = vld [vmem:[%s947 + $0x8] sm:$0x1]
        %v950 = vld [vmem:[%s947 + $0x10] sm:$0xff]
        %v951 = vld [vmem:[%s947 + $0x18] sm:$0x1]
        %v952 = vld [vmem:[%s947 + $0x20] sm:$0xff]
        %v953 = vld [vmem:[%s947 + $0x28] sm:$0x1]
        %v954 = vld [vmem:[%s947 + $0x30] sm:$0xff]
        %v955 = vld [vmem:[%s947 + $0x38] sm:$0x1]
        %v956 = vld [vmem:[%s947 + $0x40] sm:$0xff]
        %v957 = vld [vmem:[%s947 + $0x48] sm:$0x1]
        %v958 = vld [vmem:[%s947 + $0x50] sm:$0xff]
        %v959 = vld [vmem:[%s947 + $0x58] sm:$0x1]
        %v960 = vld [vmem:[%s947 + $0x60] sm:$0xff]
        %v961 = vld [vmem:[%s947 + $0x68] sm:$0x1]
        %v962 = vlaneseq
        %v963 = vshrl.u32 %v962, 7
        %v964 = vsub.s32 0, %v963
        %v965 = vrot.slane %v946, %v964
        %v966 = vmul.f32 %v948, %v965
        %v967 = vmul.f32 %v950, %v965
        %v968 = vmul.f32 %v952, %v965
        %v969 = vmul.f32 %v954, %v965
        %v970 = vmul.f32 %v956, %v965
        %v971 = vmul.f32 %v958, %v965
        %v972 = vmul.f32 %v960, %v965
        %v973 = vadd.f32 %v938, %v966
        %v974 = vadd.f32 %v939, %v967
        %v975 = vadd.f32 %v940, %v968
        %v976 = vadd.f32 %v941, %v969
        %v977 = vadd.f32 %v942, %v970
        %v978 = vadd.f32 %v943, %v971
        %v979 = vadd.f32 %v944, %v972
        %v980 = vld [vmem:[%s945 + $0x1] sm:$0x1]
        %s981 = scalar_lea.vmem [#allocation2], 160
        %v982 = vld [vmem:[%s981] sm:$0xff]
        %v983 = vld [vmem:[%s981 + $0x10] sm:$0xff]
        %v984 = vld [vmem:[%s981 + $0x20] sm:$0xff]
        %v985 = vld [vmem:[%s981 + $0x30] sm:$0xff]
        %v986 = vld [vmem:[%s981 + $0x40] sm:$0xff]
        %v987 = vld [vmem:[%s981 + $0x50] sm:$0xff]
        %v988 = vld [vmem:[%s981 + $0x60] sm:$0xff]
        %v989 = vlaneseq
        %v990 = vshrl.u32 %v989, 7
        %v991 = vsub.s32 0, %v990
        %v992 = vrot.slane %v980, %v991
        %v993 = vmul.f32 %v982, %v992
        %v994 = vmul.f32 %v983, %v992
        %v995 = vmul.f32 %v984, %v992
        %v996 = vmul.f32 %v985, %v992
        %v997 = vmul.f32 %v986, %v992
        %v998 = vmul.f32 %v987, %v992
        %v999 = vmul.f32 %v988, %v992
        %v1000 = vadd.f32 %v973, %v993
        %v1001 = vadd.f32 %v974, %v994
        %v1002 = vadd.f32 %v975, %v995
        %v1003 = vadd.f32 %v976, %v996
        %v1004 = vadd.f32 %v977, %v997
        %v1005 = vadd.f32 %v978, %v998
        %v1006 = vadd.f32 %v979, %v999
        %s1007 = scalar_lea.vmem %s498, 24 [#allocation4]
        %v1008 = vld [vmem:[%s1007] sm:$0x1]
        %s1009 = scalar_lea.vmem [#allocation2], 304
        %v1010 = vld [vmem:[%s1009] sm:$0xff]
        %v1011 = vld [vmem:[%s1009 + $0x8] sm:$0x1]
        %v1012 = vld [vmem:[%s1009 + $0x10] sm:$0xff]
        %v1013 = vld [vmem:[%s1009 + $0x18] sm:$0x1]
        %v1014 = vld [vmem:[%s1009 + $0x20] sm:$0xff]
        %v1015 = vld [vmem:[%s1009 + $0x28] sm:$0x1]
        %v1016 = vld [vmem:[%s1009 + $0x30] sm:$0xff]
        %v1017 = vld [vmem:[%s1009 + $0x38] sm:$0x1]
        %v1018 = vld [vmem:[%s1009 + $0x40] sm:$0xff]
        %v1019 = vld [vmem:[%s1009 + $0x48] sm:$0x1]
        %v1020 = vld [vmem:[%s1009 + $0x50] sm:$0xff]
        %v1021 = vld [vmem:[%s1009 + $0x58] sm:$0x1]
        %v1022 = vld [vmem:[%s1009 + $0x60] sm:$0xff]
        %v1023 = vld [vmem:[%s1009 + $0x68] sm:$0x1]
        %v1024 = vlaneseq
        %v1025 = vshrl.u32 %v1024, 7
        %v1026 = vsub.s32 0, %v1025
        %v1027 = vrot.slane %v1008, %v1026
        %v1028 = vmul.f32 %v1010, %v1027
        %v1029 = vmul.f32 %v1012, %v1027
        %v1030 = vmul.f32 %v1014, %v1027
        %v1031 = vmul.f32 %v1016, %v1027
        %v1032 = vmul.f32 %v1018, %v1027
        %v1033 = vmul.f32 %v1020, %v1027
        %v1034 = vmul.f32 %v1022, %v1027
        %v1035 = vadd.f32 %v1000, %v1028
        %v1036 = vadd.f32 %v1001, %v1029
        %v1037 = vadd.f32 %v1002, %v1030
        %v1038 = vadd.f32 %v1003, %v1031
        %v1039 = vadd.f32 %v1004, %v1032
        %v1040 = vadd.f32 %v1005, %v1033
        %v1041 = vadd.f32 %v1006, %v1034
        %v1042 = vld [vmem:[%s1007 + $0x1] sm:$0x1]
        %s1043 = scalar_lea.vmem [#allocation2], 448
        %v1044 = vld [vmem:[%s1043] sm:$0xff]
        %v1045 = vld [vmem:[%s1043 + $0x10] sm:$0xff]
        %v1046 = vld [vmem:[%s1043 + $0x20] sm:$0xff]
        %v1047 = vld [vmem:[%s1043 + $0x30] sm:$0xff]
        %v1048 = vld [vmem:[%s1043 + $0x40] sm:$0xff]
        %v1049 = vld [vmem:[%s1043 + $0x50] sm:$0xff]
        %v1050 = vld [vmem:[%s1043 + $0x60] sm:$0xff]
        %v1051 = vlaneseq
        %v1052 = vshrl.u32 %v1051, 7
        %v1053 = vsub.s32 0, %v1052
        %v1054 = vrot.slane %v1042, %v1053
        %v1055 = vmul.f32 %v1044, %v1054
        %v1056 = vmul.f32 %v1045, %v1054
        %v1057 = vmul.f32 %v1046, %v1054
        %v1058 = vmul.f32 %v1047, %v1054
        %v1059 = vmul.f32 %v1048, %v1054
        %v1060 = vmul.f32 %v1049, %v1054
        %v1061 = vmul.f32 %v1050, %v1054
        %v1062 = vadd.f32 %v1035, %v1055
        %v1063 = vadd.f32 %v1036, %v1056
        %v1064 = vadd.f32 %v1037, %v1057
        %v1065 = vadd.f32 %v1038, %v1058
        %v1066 = vadd.f32 %v1039, %v1059
        %v1067 = vadd.f32 %v1040, %v1060
        %v1068 = vadd.f32 %v1041, %v1061
        %s1069 = scalar_lea.vmem %s498, 32 [#allocation4]
        %v1070 = vld [vmem:[%s1069] sm:$0x1]
        %s1071 = scalar_lea.vmem [#allocation2], 32
        %v1072 = vld [vmem:[%s1071] sm:$0xff]
        %v1073 = vld [vmem:[%s1071 + $0x8] sm:$0x1]
        %v1074 = vld [vmem:[%s1071 + $0x10] sm:$0xff]
        %v1075 = vld [vmem:[%s1071 + $0x18] sm:$0x1]
        %v1076 = vld [vmem:[%s1071 + $0x20] sm:$0xff]
        %v1077 = vld [vmem:[%s1071 + $0x28] sm:$0x1]
        %v1078 = vld [vmem:[%s1071 + $0x30] sm:$0xff]
        %v1079 = vld [vmem:[%s1071 + $0x38] sm:$0x1]
        %v1080 = vld [vmem:[%s1071 + $0x40] sm:$0xff]
        %v1081 = vld [vmem:[%s1071 + $0x48] sm:$0x1]
        %v1082 = vld [vmem:[%s1071 + $0x50] sm:$0xff]
        %v1083 = vld [vmem:[%s1071 + $0x58] sm:$0x1]
        %v1084 = vld [vmem:[%s1071 + $0x60] sm:$0xff]
        %v1085 = vld [vmem:[%s1071 + $0x68] sm:$0x1]
        %v1086 = vlaneseq
        %v1087 = vshrl.u32 %v1086, 7
        %v1088 = vsub.s32 0, %v1087
        %v1089 = vrot.slane %v1070, %v1088
        %v1090 = vmul.f32 %v1072, %v1089
        %v1091 = vmul.f32 %v1074, %v1089
        %v1092 = vmul.f32 %v1076, %v1089
        %v1093 = vmul.f32 %v1078, %v1089
        %v1094 = vmul.f32 %v1080, %v1089
        %v1095 = vmul.f32 %v1082, %v1089
        %v1096 = vmul.f32 %v1084, %v1089
        %v1097 = vadd.f32 %v1062, %v1090
        %v1098 = vadd.f32 %v1063, %v1091
        %v1099 = vadd.f32 %v1064, %v1092
        %v1100 = vadd.f32 %v1065, %v1093
        %v1101 = vadd.f32 %v1066, %v1094
        %v1102 = vadd.f32 %v1067, %v1095
        %v1103 = vadd.f32 %v1068, %v1096
        %v1104 = vld [vmem:[%s1069 + $0x1] sm:$0x1]
        %s1105 = scalar_lea.vmem [#allocation2], 176
        %v1106 = vld [vmem:[%s1105] sm:$0xff]
        %v1107 = vld [vmem:[%s1105 + $0x10] sm:$0xff]
        %v1108 = vld [vmem:[%s1105 + $0x20] sm:$0xff]
        %v1109 = vld [vmem:[%s1105 + $0x30] sm:$0xff]
        %v1110 = vld [vmem:[%s1105 + $0x40] sm:$0xff]
        %v1111 = vld [vmem:[%s1105 + $0x50] sm:$0xff]
        %v1112 = vld [vmem:[%s1105 + $0x60] sm:$0xff]
        %v1113 = vlaneseq
        %v1114 = vshrl.u32 %v1113, 7
        %v1115 = vsub.s32 0, %v1114
        %v1116 = vrot.slane %v1104, %v1115
        %v1117 = vmul.f32 %v1106, %v1116
        %v1118 = vmul.f32 %v1107, %v1116
        %v1119 = vmul.f32 %v1108, %v1116
        %v1120 = vmul.f32 %v1109, %v1116
        %v1121 = vmul.f32 %v1110, %v1116
        %v1122 = vmul.f32 %v1111, %v1116
        %v1123 = vmul.f32 %v1112, %v1116
        %v1124 = vadd.f32 %v1097, %v1117
        %v1125 = vadd.f32 %v1098, %v1118
        %v1126 = vadd.f32 %v1099, %v1119
        %v1127 = vadd.f32 %v1100, %v1120
        %v1128 = vadd.f32 %v1101, %v1121
        %v1129 = vadd.f32 %v1102, %v1122
        %v1130 = vadd.f32 %v1103, %v1123
        %v1131 = vadd.f32 %v1124, 0.0
        %v1132 = vadd.f32 %v1125, 0.0
        %v1133 = vadd.f32 %v1126, 0.0
        %v1134 = vadd.f32 %v1127, 0.0
        %v1135 = vadd.f32 %v1128, 0.0
        %v1136 = vadd.f32 %v1129, 0.0
        %v1137 = vadd.f32 %v1130, 0.0
        %v1138 = vld [vmem:[%s498 + $0x2] sm:$0x1]
        %v1139 = vlaneseq
        %v1140 = vshrl.u32 %v1139, 7
        %v1141 = vsub.s32 0, %v1140
        %v1142 = vrot.slane %v1138, %v1141
        %v1143 = vmul.f32 %v827, %v1142
        %v1144 = vmul.f32 %v829, %v1142
        %v1145 = vmul.f32 %v831, %v1142
        %v1146 = vmul.f32 %v833, %v1142
        %v1147 = vmul.f32 %v835, %v1142
        %v1148 = vmul.f32 %v837, %v1142
        %v1149 = vmul.f32 %v839, %v1142
        %v1150 = vadd.f32 %v1143, 0.0
        %v1151 = vadd.f32 %v1144, 0.0
        %v1152 = vadd.f32 %v1145, 0.0
        %v1153 = vadd.f32 %v1146, 0.0
        %v1154 = vadd.f32 %v1147, 0.0
        %v1155 = vadd.f32 %v1148, 0.0
        %v1156 = vadd.f32 %v1149, 0.0
        %v1157 = vld [vmem:[%s498 + $0x3] sm:$0x1]
        %v1158 = vlaneseq
        %v1159 = vshrl.u32 %v1158, 7
        %v1160 = vsub.s32 0, %v1159
        %v1161 = vrot.slane %v1157, %v1160
        %v1162 = vmul.f32 %v860, %v1161
        %v1163 = vmul.f32 %v861, %v1161
        %v1164 = vmul.f32 %v862, %v1161
        %v1165 = vmul.f32 %v863, %v1161
        %v1166 = vmul.f32 %v864, %v1161
        %v1167 = vmul.f32 %v865, %v1161
        %v1168 = vmul.f32 %v866, %v1161
        %v1169 = vadd.f32 %v1150, %v1162
        %v1170 = vadd.f32 %v1151, %v1163
        %v1171 = vadd.f32 %v1152, %v1164
        %v1172 = vadd.f32 %v1153, %v1165
        %v1173 = vadd.f32 %v1154, %v1166
        %v1174 = vadd.f32 %v1155, %v1167
        %v1175 = vadd.f32 %v1156, %v1168
        %v1176 = vld [vmem:[%s885 + $0x2] sm:$0x1]
        %v1177 = vlaneseq
        %v1178 = vshrl.u32 %v1177, 7
        %v1179 = vsub.s32 0, %v1178
        %v1180 = vrot.slane %v1176, %v1179
        %v1181 = vmul.f32 %v887, %v1180
        %v1182 = vmul.f32 %v889, %v1180
        %v1183 = vmul.f32 %v891, %v1180
        %v1184 = vmul.f32 %v893, %v1180
        %v1185 = vmul.f32 %v895, %v1180
        %v1186 = vmul.f32 %v897, %v1180
        %v1187 = vmul.f32 %v899, %v1180
        %v1188 = vadd.f32 %v1169, %v1181
        %v1189 = vadd.f32 %v1170, %v1182
        %v1190 = vadd.f32 %v1171, %v1183
        %v1191 = vadd.f32 %v1172, %v1184
        %v1192 = vadd.f32 %v1173, %v1185
        %v1193 = vadd.f32 %v1174, %v1186
        %v1194 = vadd.f32 %v1175, %v1187
        %v1195 = vld [vmem:[%s885 + $0x3] sm:$0x1]
        %v1196 = vlaneseq
        %v1197 = vshrl.u32 %v1196, 7
        %v1198 = vsub.s32 0, %v1197
        %v1199 = vrot.slane %v1195, %v1198
        %v1200 = vmul.f32 %v920, %v1199
        %v1201 = vmul.f32 %v921, %v1199
        %v1202 = vmul.f32 %v922, %v1199
        %v1203 = vmul.f32 %v923, %v1199
        %v1204 = vmul.f32 %v924, %v1199
        %v1205 = vmul.f32 %v925, %v1199
        %v1206 = vmul.f32 %v926, %v1199
        %v1207 = vadd.f32 %v1188, %v1200
        %v1208 = vadd.f32 %v1189, %v1201
        %v1209 = vadd.f32 %v1190, %v1202
        %v1210 = vadd.f32 %v1191, %v1203
        %v1211 = vadd.f32 %v1192, %v1204
        %v1212 = vadd.f32 %v1193, %v1205
        %v1213 = vadd.f32 %v1194, %v1206
        %v1214 = vld [vmem:[%s945 + $0x2] sm:$0x1]
        %v1215 = vlaneseq
        %v1216 = vshrl.u32 %v1215, 7
        %v1217 = vsub.s32 0, %v1216
        %v1218 = vrot.slane %v1214, %v1217
        %v1219 = vmul.f32 %v948, %v1218
        %v1220 = vmul.f32 %v950, %v1218
        %v1221 = vmul.f32 %v952, %v1218
        %v1222 = vmul.f32 %v954, %v1218
        %v1223 = vmul.f32 %v956, %v1218
        %v1224 = vmul.f32 %v958, %v1218
        %v1225 = vmul.f32 %v960, %v1218
        %v1226 = vadd.f32 %v1207, %v1219
        %v1227 = vadd.f32 %v1208, %v1220
        %v1228 = vadd.f32 %v1209, %v1221
        %v1229 = vadd.f32 %v1210, %v1222
        %v1230 = vadd.f32 %v1211, %v1223
        %v1231 = vadd.f32 %v1212, %v1224
        %v1232 = vadd.f32 %v1213, %v1225
        %v1233 = vld [vmem:[%s945 + $0x3] sm:$0x1]
        %v1234 = vlaneseq
        %v1235 = vshrl.u32 %v1234, 7
        %v1236 = vsub.s32 0, %v1235
        %v1237 = vrot.slane %v1233, %v1236
        %v1238 = vmul.f32 %v982, %v1237
        %v1239 = vmul.f32 %v983, %v1237
        %v1240 = vmul.f32 %v984, %v1237
        %v1241 = vmul.f32 %v985, %v1237
        %v1242 = vmul.f32 %v986, %v1237
        %v1243 = vmul.f32 %v987, %v1237
        %v1244 = vmul.f32 %v988, %v1237
        %v1245 = vadd.f32 %v1226, %v1238
        %v1246 = vadd.f32 %v1227, %v1239
        %v1247 = vadd.f32 %v1228, %v1240
        %v1248 = vadd.f32 %v1229, %v1241
        %v1249 = vadd.f32 %v1230, %v1242
        %v1250 = vadd.f32 %v1231, %v1243
        %v1251 = vadd.f32 %v1232, %v1244
        %v1252 = vld [vmem:[%s1007 + $0x2] sm:$0x1]
        %v1253 = vlaneseq
        %v1254 = vshrl.u32 %v1253, 7
        %v1255 = vsub.s32 0, %v1254
        %v1256 = vrot.slane %v1252, %v1255
        %v1257 = vmul.f32 %v1010, %v1256
        %v1258 = vmul.f32 %v1012, %v1256
        %v1259 = vmul.f32 %v1014, %v1256
        %v1260 = vmul.f32 %v1016, %v1256
        %v1261 = vmul.f32 %v1018, %v1256
        %v1262 = vmul.f32 %v1020, %v1256
        %v1263 = vmul.f32 %v1022, %v1256
        %v1264 = vadd.f32 %v1245, %v1257
        %v1265 = vadd.f32 %v1246, %v1258
        %v1266 = vadd.f32 %v1247, %v1259
        %v1267 = vadd.f32 %v1248, %v1260
        %v1268 = vadd.f32 %v1249, %v1261
        %v1269 = vadd.f32 %v1250, %v1262
        %v1270 = vadd.f32 %v1251, %v1263
        %v1271 = vld [vmem:[%s1007 + $0x3] sm:$0x1]
        %v1272 = vlaneseq
        %v1273 = vshrl.u32 %v1272, 7
        %v1274 = vsub.s32 0, %v1273
        %v1275 = vrot.slane %v1271, %v1274
        %v1276 = vmul.f32 %v1044, %v1275
        %v1277 = vmul.f32 %v1045, %v1275
        %v1278 = vmul.f32 %v1046, %v1275
        %v1279 = vmul.f32 %v1047, %v1275
        %v1280 = vmul.f32 %v1048, %v1275
        %v1281 = vmul.f32 %v1049, %v1275
        %v1282 = vmul.f32 %v1050, %v1275
        %v1283 = vadd.f32 %v1264, %v1276
        %v1284 = vadd.f32 %v1265, %v1277
        %v1285 = vadd.f32 %v1266, %v1278
        %v1286 = vadd.f32 %v1267, %v1279
        %v1287 = vadd.f32 %v1268, %v1280
        %v1288 = vadd.f32 %v1269, %v1281
        %v1289 = vadd.f32 %v1270, %v1282
        %v1290 = vld [vmem:[%s1069 + $0x2] sm:$0x1]
        %v1291 = vlaneseq
        %v1292 = vshrl.u32 %v1291, 7
        %v1293 = vsub.s32 0, %v1292
        %v1294 = vrot.slane %v1290, %v1293
        %v1295 = vmul.f32 %v1072, %v1294
        %v1296 = vmul.f32 %v1074, %v1294
        %v1297 = vmul.f32 %v1076, %v1294
        %v1298 = vmul.f32 %v1078, %v1294
        %v1299 = vmul.f32 %v1080, %v1294
        %v1300 = vmul.f32 %v1082, %v1294
        %v1301 = vmul.f32 %v1084, %v1294
        %v1302 = vadd.f32 %v1283, %v1295
        %v1303 = vadd.f32 %v1284, %v1296
        %v1304 = vadd.f32 %v1285, %v1297
        %v1305 = vadd.f32 %v1286, %v1298
        %v1306 = vadd.f32 %v1287, %v1299
        %v1307 = vadd.f32 %v1288, %v1300
        %v1308 = vadd.f32 %v1289, %v1301
        %v1309 = vld [vmem:[%s1069 + $0x3] sm:$0x1]
        %v1310 = vlaneseq
        %v1311 = vshrl.u32 %v1310, 7
        %v1312 = vsub.s32 0, %v1311
        %v1313 = vrot.slane %v1309, %v1312
        %v1314 = vmul.f32 %v1106, %v1313
        %v1315 = vmul.f32 %v1107, %v1313
        %v1316 = vmul.f32 %v1108, %v1313
        %v1317 = vmul.f32 %v1109, %v1313
        %v1318 = vmul.f32 %v1110, %v1313
        %v1319 = vmul.f32 %v1111, %v1313
        %v1320 = vmul.f32 %v1112, %v1313
        %v1321 = vadd.f32 %v1302, %v1314
        %v1322 = vadd.f32 %v1303, %v1315
        %v1323 = vadd.f32 %v1304, %v1316
        %v1324 = vadd.f32 %v1305, %v1317
        %v1325 = vadd.f32 %v1306, %v1318
        %v1326 = vadd.f32 %v1307, %v1319
        %v1327 = vadd.f32 %v1308, %v1320
        %v1335 = vrot.slane %v1321, 1
        %v1336 = vrot.slane %v1322, 1
        %v1337 = vrot.slane %v1323, 1
        %v1338 = vrot.slane %v1324, 1
        %v1339 = vrot.slane %v1325, 1
        %v1340 = vrot.slane %v1326, 1
        %v1341 = vrot.slane %v1327, 1
        %v1349 = vadd.f32 %v1131, %v1335
        %v1350 = vadd.f32 %v1132, %v1336
        %v1351 = vadd.f32 %v1133, %v1337
        %v1352 = vadd.f32 %v1134, %v1338
        %v1353 = vadd.f32 %v1135, %v1339
        %v1354 = vadd.f32 %v1136, %v1340
        %v1355 = vadd.f32 %v1137, %v1341
        %v1356 = vld [vmem:[%s498 + $0x4] sm:$0x1]
        %v1357 = vlaneseq
        %v1358 = vshrl.u32 %v1357, 7
        %v1359 = vsub.s32 0, %v1358
        %v1360 = vrot.slane %v1356, %v1359
        %v1361 = vmul.f32 %v827, %v1360
        %v1362 = vmul.f32 %v828, %v1360
        %v1363 = vmul.f32 %v829, %v1360
        %v1364 = vmul.f32 %v830, %v1360
        %v1365 = vmul.f32 %v831, %v1360
        %v1366 = vmul.f32 %v832, %v1360
        %v1367 = vmul.f32 %v833, %v1360
        %v1368 = vmul.f32 %v834, %v1360
        %v1369 = vmul.f32 %v835, %v1360
        %v1370 = vmul.f32 %v836, %v1360
        %v1371 = vmul.f32 %v837, %v1360
        %v1372 = vmul.f32 %v838, %v1360
        %v1373 = vmul.f32 %v839, %v1360
        %v1374 = vmul.f32 %v840, %v1360
        %v1375 = vadd.f32 %v1361, 0.0
        %v1376 = vadd.f32 %v1362, 0.0
        %v1377 = vadd.f32 %v1363, 0.0
        %v1378 = vadd.f32 %v1364, 0.0
        %v1379 = vadd.f32 %v1365, 0.0
        %v1380 = vadd.f32 %v1366, 0.0
        %v1381 = vadd.f32 %v1367, 0.0
        %v1382 = vadd.f32 %v1368, 0.0
        %v1383 = vadd.f32 %v1369, 0.0
        %v1384 = vadd.f32 %v1370, 0.0
        %v1385 = vadd.f32 %v1371, 0.0
        %v1386 = vadd.f32 %v1372, 0.0
        %v1387 = vadd.f32 %v1373, 0.0
        %v1388 = vadd.f32 %v1374, 0.0
        %v1389 = vld [vmem:[%s885 + $0x4] sm:$0x1]
        %v1390 = vlaneseq
        %v1391 = vshrl.u32 %v1390, 7
        %v1392 = vsub.s32 0, %v1391
        %v1393 = vrot.slane %v1389, %v1392
        %v1394 = vmul.f32 %v887, %v1393
        %v1395 = vmul.f32 %v888, %v1393
        %v1396 = vmul.f32 %v889, %v1393
        %v1397 = vmul.f32 %v890, %v1393
        %v1398 = vmul.f32 %v891, %v1393
        %v1399 = vmul.f32 %v892, %v1393
        %v1400 = vmul.f32 %v893, %v1393
        %v1401 = vmul.f32 %v894, %v1393
        %v1402 = vmul.f32 %v895, %v1393
        %v1403 = vmul.f32 %v896, %v1393
        %v1404 = vmul.f32 %v897, %v1393
        %v1405 = vmul.f32 %v898, %v1393
        %v1406 = vmul.f32 %v899, %v1393
        %v1407 = vmul.f32 %v900, %v1393
        %v1408 = vadd.f32 %v1375, %v1394
        %v1409 = vadd.f32 %v1376, %v1395
        %v1410 = vadd.f32 %v1377, %v1396
        %v1411 = vadd.f32 %v1378, %v1397
        %v1412 = vadd.f32 %v1379, %v1398
        %v1413 = vadd.f32 %v1380, %v1399
        %v1414 = vadd.f32 %v1381, %v1400
        %v1415 = vadd.f32 %v1382, %v1401
        %v1416 = vadd.f32 %v1383, %v1402
        %v1417 = vadd.f32 %v1384, %v1403
        %v1418 = vadd.f32 %v1385, %v1404
        %v1419 = vadd.f32 %v1386, %v1405
        %v1420 = vadd.f32 %v1387, %v1406
        %v1421 = vadd.f32 %v1388, %v1407
        %v1422 = vld [vmem:[%s945 + $0x4] sm:$0x1]
        %v1423 = vlaneseq
        %v1424 = vshrl.u32 %v1423, 7
        %v1425 = vsub.s32 0, %v1424
        %v1426 = vrot.slane %v1422, %v1425
        %v1427 = vmul.f32 %v948, %v1426
        %v1428 = vmul.f32 %v949, %v1426
        %v1429 = vmul.f32 %v950, %v1426
        %v1430 = vmul.f32 %v951, %v1426
        %v1431 = vmul.f32 %v952, %v1426
        %v1432 = vmul.f32 %v953, %v1426
        %v1433 = vmul.f32 %v954, %v1426
        %v1434 = vmul.f32 %v955, %v1426
        %v1435 = vmul.f32 %v956, %v1426
        %v1436 = vmul.f32 %v957, %v1426
        %v1437 = vmul.f32 %v958, %v1426
        %v1438 = vmul.f32 %v959, %v1426
        %v1439 = vmul.f32 %v960, %v1426
        %v1440 = vmul.f32 %v961, %v1426
        %v1441 = vadd.f32 %v1408, %v1427
        %v1442 = vadd.f32 %v1409, %v1428
        %v1443 = vadd.f32 %v1410, %v1429
        %v1444 = vadd.f32 %v1411, %v1430
        %v1445 = vadd.f32 %v1412, %v1431
        %v1446 = vadd.f32 %v1413, %v1432
        %v1447 = vadd.f32 %v1414, %v1433
        %v1448 = vadd.f32 %v1415, %v1434
        %v1449 = vadd.f32 %v1416, %v1435
        %v1450 = vadd.f32 %v1417, %v1436
        %v1451 = vadd.f32 %v1418, %v1437
        %v1452 = vadd.f32 %v1419, %v1438
        %v1453 = vadd.f32 %v1420, %v1439
        %v1454 = vadd.f32 %v1421, %v1440
        %v1455 = vld [vmem:[%s1007 + $0x4] sm:$0x1]
        %v1456 = vlaneseq
        %v1457 = vshrl.u32 %v1456, 7
        %v1458 = vsub.s32 0, %v1457
        %v1459 = vrot.slane %v1455, %v1458
        %v1460 = vmul.f32 %v1010, %v1459
        %v1461 = vmul.f32 %v1011, %v1459
        %v1462 = vmul.f32 %v1012, %v1459
        %v1463 = vmul.f32 %v1013, %v1459
        %v1464 = vmul.f32 %v1014, %v1459
        %v1465 = vmul.f32 %v1015, %v1459
        %v1466 = vmul.f32 %v1016, %v1459
        %v1467 = vmul.f32 %v1017, %v1459
        %v1468 = vmul.f32 %v1018, %v1459
        %v1469 = vmul.f32 %v1019, %v1459
        %v1470 = vmul.f32 %v1020, %v1459
        %v1471 = vmul.f32 %v1021, %v1459
        %v1472 = vmul.f32 %v1022, %v1459
        %v1473 = vmul.f32 %v1023, %v1459
        %v1474 = vadd.f32 %v1441, %v1460
        %v1475 = vadd.f32 %v1442, %v1461
        %v1476 = vadd.f32 %v1443, %v1462
        %v1477 = vadd.f32 %v1444, %v1463
        %v1478 = vadd.f32 %v1445, %v1464
        %v1479 = vadd.f32 %v1446, %v1465
        %v1480 = vadd.f32 %v1447, %v1466
        %v1481 = vadd.f32 %v1448, %v1467
        %v1482 = vadd.f32 %v1449, %v1468
        %v1483 = vadd.f32 %v1450, %v1469
        %v1484 = vadd.f32 %v1451, %v1470
        %v1485 = vadd.f32 %v1452, %v1471
        %v1486 = vadd.f32 %v1453, %v1472
        %v1487 = vadd.f32 %v1454, %v1473
        %v1488 = vld [vmem:[%s1069 + $0x4] sm:$0x1]
        %v1489 = vlaneseq
        %v1490 = vshrl.u32 %v1489, 7
        %v1491 = vsub.s32 0, %v1490
        %v1492 = vrot.slane %v1488, %v1491
        %v1493 = vmul.f32 %v1072, %v1492
        %v1494 = vmul.f32 %v1073, %v1492
        %v1495 = vmul.f32 %v1074, %v1492
        %v1496 = vmul.f32 %v1075, %v1492
        %v1497 = vmul.f32 %v1076, %v1492
        %v1498 = vmul.f32 %v1077, %v1492
        %v1499 = vmul.f32 %v1078, %v1492
        %v1500 = vmul.f32 %v1079, %v1492
        %v1501 = vmul.f32 %v1080, %v1492
        %v1502 = vmul.f32 %v1081, %v1492
        %v1503 = vmul.f32 %v1082, %v1492
        %v1504 = vmul.f32 %v1083, %v1492
        %v1505 = vmul.f32 %v1084, %v1492
        %v1506 = vmul.f32 %v1085, %v1492
        %v1507 = vadd.f32 %v1474, %v1493
        %v1508 = vadd.f32 %v1475, %v1494
        %v1509 = vadd.f32 %v1476, %v1495
        %v1510 = vadd.f32 %v1477, %v1496
        %v1511 = vadd.f32 %v1478, %v1497
        %v1512 = vadd.f32 %v1479, %v1498
        %v1513 = vadd.f32 %v1480, %v1499
        %v1514 = vadd.f32 %v1481, %v1500
        %v1515 = vadd.f32 %v1482, %v1501
        %v1516 = vadd.f32 %v1483, %v1502
        %v1517 = vadd.f32 %v1484, %v1503
        %v1518 = vadd.f32 %v1485, %v1504
        %v1519 = vadd.f32 %v1486, %v1505
        %v1520 = vadd.f32 %v1487, %v1506
        %vm1535 = vcmask 1045504
        %v1536 = vrot.slane %v1507, 2
        %v1537 = vrot.slane %v1508, 2
        %v1538 = vsel %vm1535, %v1536, %v1537
        %v1539 = vrot.slane %v1509, 2
        %v1540 = vrot.slane %v1510, 2
        %v1541 = vsel %vm1535, %v1539, %v1540
        %v1542 = vrot.slane %v1511, 2
        %v1543 = vrot.slane %v1512, 2
        %v1544 = vsel %vm1535, %v1542, %v1543
        %v1545 = vrot.slane %v1513, 2
        %v1546 = vrot.slane %v1514, 2
        %v1547 = vsel %vm1535, %v1545, %v1546
        %v1548 = vrot.slane %v1515, 2
        %v1549 = vrot.slane %v1516, 2
        %v1550 = vsel %vm1535, %v1548, %v1549
        %v1551 = vrot.slane %v1517, 2
        %v1552 = vrot.slane %v1518, 2
        %v1553 = vsel %vm1535, %v1551, %v1552
        %v1554 = vrot.slane %v1519, 2
        %v1555 = vrot.slane %v1520, 2
        %v1556 = vsel %vm1535, %v1554, %v1555
        %v1564 = vadd.f32 %v1349, %v1538
        %v1565 = vadd.f32 %v1350, %v1541
        %v1566 = vadd.f32 %v1351, %v1544
        %v1567 = vadd.f32 %v1352, %v1547
        %v1568 = vadd.f32 %v1353, %v1550
        %v1569 = vadd.f32 %v1354, %v1553
        %v1570 = vadd.f32 %v1355, %v1556
        %vm1571 = vcmask 1046528
        %v1572 = vsel %vm1571, %v1564, 0.0
        %v1573 = vrot.slane %v1572, 4
        %v1574 = vadd.f32 %v1572, %v1573
        %v1575 = vrot.slane %v1574, 2
        %v1576 = vadd.f32 %v1574, %v1575
        %v1577 = vrot.slane %v1576, 1
        %v1578 = vadd.f32 %v1576, %v1577
        %v1579 = vsel %vm1571, %v1565, 0.0
        %v1580 = vrot.slane %v1579, 4
        %v1581 = vadd.f32 %v1579, %v1580
        %v1582 = vrot.slane %v1581, 2
        %v1583 = vadd.f32 %v1581, %v1582
        %v1584 = vrot.slane %v1583, 1
        %v1585 = vadd.f32 %v1583, %v1584
        %v1586 = vsel %vm1571, %v1566, 0.0
        %v1587 = vrot.slane %v1586, 4
        %v1588 = vadd.f32 %v1586, %v1587
        %v1589 = vrot.slane %v1588, 2
        %v1590 = vadd.f32 %v1588, %v1589
        %v1591 = vrot.slane %v1590, 1
        %v1592 = vadd.f32 %v1590, %v1591
        %v1593 = vsel %vm1571, %v1567, 0.0
        %v1594 = vrot.slane %v1593, 4
        %v1595 = vadd.f32 %v1593, %v1594
        %v1596 = vrot.slane %v1595, 2
        %v1597 = vadd.f32 %v1595, %v1596
        %v1598 = vrot.slane %v1597, 1
        %v1599 = vadd.f32 %v1597, %v1598
        %v1600 = vsel %vm1571, %v1568, 0.0
        %v1601 = vrot.slane %v1600, 4
        %v1602 = vadd.f32 %v1600, %v1601
        %v1603 = vrot.slane %v1602, 2
        %v1604 = vadd.f32 %v1602, %v1603
        %v1605 = vrot.slane %v1604, 1
        %v1606 = vadd.f32 %v1604, %v1605
        %v1607 = vsel %vm1571, %v1569, 0.0
        %v1608 = vrot.slane %v1607, 4
        %v1609 = vadd.f32 %v1607, %v1608
        %v1610 = vrot.slane %v1609, 2
        %v1611 = vadd.f32 %v1609, %v1610
        %v1612 = vrot.slane %v1611, 1
        %v1613 = vadd.f32 %v1611, %v1612
        %v1614 = vsel %vm1571, %v1570, 0.0
        %v1615 = vrot.slane %v1614, 4
        %v1616 = vadd.f32 %v1614, %v1615
        %v1617 = vrot.slane %v1616, 2
        %v1618 = vadd.f32 %v1616, %v1617
        %v1619 = vrot.slane %v1618, 1
        %v1620 = vadd.f32 %v1618, %v1619
        %v1621 = vadd.f32 %v1578, %v1585
        %v1622 = vadd.f32 %v1621, %v1592
        %v1623 = vadd.f32 %v1622, %v1599
        %v1624 = vadd.f32 %v1623, %v1606
        %v1625 = vadd.f32 %v1624, %v1613
        %v1626 = vadd.f32 %v1625, %v1620
        %v1627 = vadd.f32 %v1626, 0.0
        %v1628 = vmul.f32 %v1564, %v1564
        %v1629 = vmul.f32 %v1565, %v1565
        %v1630 = vmul.f32 %v1566, %v1566
        %v1631 = vmul.f32 %v1567, %v1567
        %v1632 = vmul.f32 %v1568, %v1568
        %v1633 = vmul.f32 %v1569, %v1569
        %v1634 = vmul.f32 %v1570, %v1570
        %v1635 = vsel %vm1571, %v1628, 0.0
        %v1636 = vrot.slane %v1635, 4
        %v1637 = vadd.f32 %v1635, %v1636
        %v1638 = vrot.slane %v1637, 2
        %v1639 = vadd.f32 %v1637, %v1638
        %v1640 = vrot.slane %v1639, 1
        %v1641 = vadd.f32 %v1639, %v1640
        %v1642 = vsel %vm1571, %v1629, 0.0
        %v1643 = vrot.slane %v1642, 4
        %v1644 = vadd.f32 %v1642, %v1643
        %v1645 = vrot.slane %v1644, 2
        %v1646 = vadd.f32 %v1644, %v1645
        %v1647 = vrot.slane %v1646, 1
        %v1648 = vadd.f32 %v1646, %v1647
        %v1649 = vsel %vm1571, %v1630, 0.0
        %v1650 = vrot.slane %v1649, 4
        %v1651 = vadd.f32 %v1649, %v1650
        %v1652 = vrot.slane %v1651, 2
        %v1653 = vadd.f32 %v1651, %v1652
        %v1654 = vrot.slane %v1653, 1
        %v1655 = vadd.f32 %v1653, %v1654
        %v1656 = vsel %vm1571, %v1631, 0.0
        %v1657 = vrot.slane %v1656, 4
        %v1658 = vadd.f32 %v1656, %v1657
        %v1659 = vrot.slane %v1658, 2
        %v1660 = vadd.f32 %v1658, %v1659
        %v1661 = vrot.slane %v1660, 1
        %v1662 = vadd.f32 %v1660, %v1661
        %v1663 = vsel %vm1571, %v1632, 0.0
        %v1664 = vrot.slane %v1663, 4
        %v1665 = vadd.f32 %v1663, %v1664
        %v1666 = vrot.slane %v1665, 2
        %v1667 = vadd.f32 %v1665, %v1666
        %v1668 = vrot.slane %v1667, 1
        %v1669 = vadd.f32 %v1667, %v1668
        %v1670 = vsel %vm1571, %v1633, 0.0
        %v1671 = vrot.slane %v1670, 4
        %v1672 = vadd.f32 %v1670, %v1671
        %v1673 = vrot.slane %v1672, 2
        %v1674 = vadd.f32 %v1672, %v1673
        %v1675 = vrot.slane %v1674, 1
        %v1676 = vadd.f32 %v1674, %v1675
        %v1677 = vsel %vm1571, %v1634, 0.0
        %v1678 = vrot.slane %v1677, 4
        %v1679 = vadd.f32 %v1677, %v1678
        %v1680 = vrot.slane %v1679, 2
        %v1681 = vadd.f32 %v1679, %v1680
        %v1682 = vrot.slane %v1681, 1
        %v1683 = vadd.f32 %v1681, %v1682
        %v1684 = vadd.f32 %v1641, %v1648
        %v1685 = vadd.f32 %v1684, %v1655
        %v1686 = vadd.f32 %v1685, %v1662
        %v1687 = vadd.f32 %v1686, %v1669
        %v1688 = vadd.f32 %v1687, %v1676
        %v1689 = vadd.f32 %v1688, %v1683
        %v1690 = vadd.f32 %v1689, 0.0
        %v1691 = vmul.f32 %v1627, 0.020408163
        %v1692 = vmul.f32 %v1690, 0.020408163
        %v1693 = vmul.f32 %v1691, %v1691
        %v1694 = vsub.f32 %v1692, %v1693
        %v1695 = vmax.f32 %v1694, 0.0
        %v1696 = vadd.f32 %v1695, 1e-05
        %v1697 = vrsqrt.pop %v1696
        %v1698 = vld [vmem:[%s532] sm:$0x1]
        %v1699 = vmul.f32 %v1697, %v1698
        %v1700 = vld [vmem:[%s535] sm:$0x1]
        %v1701 = vmul.f32 %v1691, %v1699
        %v1702 = vsub.f32 %v1700, %v1701
        %v1703 = vlaneseq
        %v1704 = vshrl.u32 %v1703, 7
        %v1705 = vsub.s32 0, %v1704
        %v1706 = vrot.slane %v1699, %v1705
        %v1707 = vmul.f32 %v1564, %v1706
        %v1708 = vmul.f32 %v1565, %v1706
        %v1709 = vmul.f32 %v1566, %v1706
        %v1710 = vmul.f32 %v1567, %v1706
        %v1711 = vmul.f32 %v1568, %v1706
        %v1712 = vmul.f32 %v1569, %v1706
        %v1713 = vmul.f32 %v1570, %v1706
        %v1715 = vlaneseq
        %v1716 = vshrl.u32 %v1715, 7
        %v1717 = vsub.s32 0, %v1716
        %v1718 = vrot.slane %v1702, %v1717
        %v1720 = vadd.f32 %v1707, %v1718
        %v1721 = vadd.f32 %v1708, %v1718
        %v1722 = vadd.f32 %v1709, %v1718
        %v1723 = vadd.f32 %v1710, %v1718
        %v1724 = vadd.f32 %v1711, %v1718
        %v1725 = vadd.f32 %v1712, %v1718
        %v1726 = vadd.f32 %v1713, %v1718
        %1727 = vst [vmem:[%s529] sm:$0x7f] %v1720
        %1728 = vst [vmem:[%s529 + $0x8] sm:$0x7f] %v1721
        %1729 = vst [vmem:[%s529 + $0x10] sm:$0x7f] %v1722
        %1730 = vst [vmem:[%s529 + $0x18] sm:$0x7f] %v1723
        %1731 = vst [vmem:[%s529 + $0x20] sm:$0x7f] %v1724
        %1732 = vst [vmem:[%s529 + $0x28] sm:$0x7f] %v1725
        %1733 = vst [vmem:[%s529 + $0x30] sm:$0x7f] %v1726
        %s1734 = sand.u32 %s127, 1
        %s1735 = sand.u32 %s127, 1
        %s1736 = smul.addr %s1735, 56
        %s1737 = scalar_lea.vmem [#allocation5], %s1736
        // Predicated region
        $region113: #{m_forward.1} parent=103 // pred_check
          %p1738 = pneg %p137
        $region114: #{m_forward.1} parent=103 // pred_check_branch
          %1740 = sbr.rel (%p1738) target = $region116
        $region115: #{m_forward.1} parent=103 // pred_region
          %s1741 = smul.addr %s15, 8
          %s1742 = scalar_lea.vmem %s4, %s1741
          // Predicated region
          $region117: #{m_forward.1} parent=115 // pred_check
            _
          $region118: #{m_forward.1} parent=115 // pred_check_branch
            %1744 = sbr.rel (0) target = $region120
          $region119: #{m_forward.1} parent=115 // pred_region
            // Predicated region
            $region121: #{m_forward.1} parent=119 // pred_check
              _
            $region122: #{m_forward.1} parent=119 // pred_check_branch
              %1746 = sbr.rel (0) target = $region124
            $region123: #{m_forward.1} parent=119 // pred_region
              // Predicated region
              $region136: #{m_forward.1} parent=123 // pred_check
                _
              $region137: #{m_forward.1} parent=123 // pred_check_branch
                %1773 = sbr.rel (0) target = $region139
              $region138: #{m_forward.1} parent=123 // pred_region
                loop: start=0, step=1, limit=1
                $region140: #{m_forward.1} parent=138 // loop_pre_header
                  _
                $region141: #{m_forward.1} parent=138 // loop_header
                  %s1775 = sphi 0, %s1779
                  %p1776 = scmp.ge.s32.totalorder %s1775, 1
                  %s1780 = sphi %s1737, %s1737
                  %s1781 = sphi %s1742, %s1742
                $region142: #{m_forward.1} parent=138 // loop_header_branch
                  %1778 = sbr.rel (%p1776) target = $region146
                $region143: #{m_forward.1} parent=138 // loop_body
                  %v1782 = vld [vmem:[%s1780] sm:$0xff]
                  %1783 = vst [vmem:[%s1781] sm:$0xff] %v1782
                  %v1784 = vld [vmem:[%s1780 + $0x8] sm:$0xff]
                  %1785 = vst [vmem:[%s1781 + $0x28] sm:$0xff] %v1784
                  %v1786 = vld [vmem:[%s1780 + $0x10] sm:$0xff]
                  %1787 = vst [vmem:[%s1781 + $0x50] sm:$0xff] %v1786
                  %v1788 = vld [vmem:[%s1780 + $0x18] sm:$0xff]
                  %1789 = vst [vmem:[%s1781 + $0x78] sm:$0xff] %v1788
                  %v1790 = vld [vmem:[%s1780 + $0x20] sm:$0xff]
                  %1791 = vst [vmem:[%s1781 + $0xa0] sm:$0xff] %v1790
                  %v1792 = vld [vmem:[%s1780 + $0x28] sm:$0xff]
                  %1793 = vst [vmem:[%s1781 + $0xc8] sm:$0xff] %v1792
                  %v1794 = vld [vmem:[%s1780 + $0x30] sm:$0xff]
                  %1795 = vst [vmem:[%s1781 + $0xf0] sm:$0xff] %v1794
                $region144: #{m_forward.1} parent=138 // loop_footer
                  %s1779 = sadd.s32 1, %s1775
                $region145: #{m_forward.1} parent=138 // loop_footer_branch
                  %1774 = sbr.rel target = $region141
                $region146: #{m_forward.1} parent=138 // loop_exit
                  _
              $region139: #{m_forward.1} parent=123 // pred_fallthru
                _
              // Predicated region
              $region147: #{m_forward.1} parent=123 // pred_check
                _
              $region148: #{m_forward.1} parent=123 // pred_check_branch
                %1797 = sbr.rel target = $region150
              $region149: #{m_forward.1} parent=123 // pred_region
                _
              $region150: #{m_forward.1} parent=123 // pred_fallthru
                _
            $region124: #{m_forward.1} parent=119 // pred_fallthru
              _
            // Predicated region
            $region125: #{m_forward.1} parent=119 // pred_check
              _
            $region126: #{m_forward.1} parent=119 // pred_check_branch
              %1748 = sbr.rel target = $region128
            $region127: #{m_forward.1} parent=119 // pred_region
              loop: start=0, step=1, limit=1
              $region129: #{m_forward.1} parent=127 // loop_pre_header
                _
              $region130: #{m_forward.1} parent=127 // loop_header
                %s1751 = sphi 0, %s1755
                %p1752 = scmp.ge.s32.totalorder %s1751, 1
                %s1756 = sphi %s1737, %s1737
                %s1757 = sphi %s1742, %s1742
              $region131: #{m_forward.1} parent=127 // loop_header_branch
                %1754 = sbr.rel (%p1752) target = $region135
              $region132: #{m_forward.1} parent=127 // loop_body
                %v1758 = vld [vmem:[%s1756] sm:$0xff]
                %1759 = vst [vmem:[%s1757] sm:$0xff] %v1758
                %v1760 = vld [vmem:[%s1756 + $0x8] sm:$0xff]
                %1761 = vst [vmem:[%s1757 + $0x28] sm:$0xff] %v1760
                %v1762 = vld [vmem:[%s1756 + $0x10] sm:$0xff]
                %1763 = vst [vmem:[%s1757 + $0x50] sm:$0xff] %v1762
                %v1764 = vld [vmem:[%s1756 + $0x18] sm:$0xff]
                %1765 = vst [vmem:[%s1757 + $0x78] sm:$0xff] %v1764
                %v1766 = vld [vmem:[%s1756 + $0x20] sm:$0xff]
                %1767 = vst [vmem:[%s1757 + $0xa0] sm:$0xff] %v1766
                %v1768 = vld [vmem:[%s1756 + $0x28] sm:$0xff]
                %1769 = vst [vmem:[%s1757 + $0xc8] sm:$0xff] %v1768
                %v1770 = vld [vmem:[%s1756 + $0x30] sm:$0xff]
                %1771 = vst [vmem:[%s1757 + $0xf0] sm:$0xff] %v1770
              $region133: #{m_forward.1} parent=127 // loop_footer
                %s1755 = sadd.s32 1, %s1751
              $region134: #{m_forward.1} parent=127 // loop_footer_branch
                %1750 = sbr.rel target = $region130
              $region135: #{m_forward.1} parent=127 // loop_exit
                _
            $region128: #{m_forward.1} parent=119 // pred_fallthru
              _
          $region120: #{m_forward.1} parent=115 // pred_fallthru
            _
          %1798 = vnop
        $region116: #{m_forward.1} parent=103 // pred_fallthru
          _
      $region104: #{m_forward.1} parent=5 // pred_fallthru
        _
      %p1799 = scmp.le.s32.totalorder 2, %s10
      // Predicated region
      $region151: #{m_forward.1} parent=5 // pred_check
        %p1800 = pneg %p1799
      $region152: #{m_forward.1} parent=5 // pred_check_branch
        %1802 = sbr.rel (%p1800) target = $region154
      $region153: #{m_forward.1} parent=5 // pred_region
        %s1803 = ssub.s32 %s10, 2
        // Predicated region
        $region155: #{m_forward.1} parent=153 // pred_check
          %p1804 = pneg %p143
        $region156: #{m_forward.1} parent=153 // pred_check_branch
          %1806 = sbr.rel (%p1804) target = $region158
        $region157: #{m_forward.1} parent=153 // pred_region
          %s1807 = sand.u32 %s128, 1
          %s1808 = sand.u32 %s128, 1
          %s1809 = smul.addr %s1808, 56
          %s1810 = scalar_lea.vmem [#allocation5], %s1809
        $region158: #{m_forward.1} parent=153 // pred_fallthru
          _
      $region154: #{m_forward.1} parent=5 // pred_fallthru
        _
    $region6: #{m_forward.1} parent=1 // loop_footer
      %s14 = sadd.s32 1, %s10
    $region7: #{m_forward.1} parent=1 // loop_footer_branch
      %9 = sbr.rel target = $region3
    $region8: #{m_forward.1} parent=1 // loop_exit
      _

</llo_original>
